<compile_context>
chip_gen: v7x
topology: tpu7x:2x2x1
jax: 0.10.0
libtpu: 0.0.40
codegen_flags: <defaults>
</compile_context>

<pallas_src>
import functools

import jax
import jax.numpy as jnp
from jax.experimental import pallas as pl
from jax.experimental.pallas import tpu as pltpu

_VMEM_LIMIT = 32 * 1024 * 1024


def _round_up(x, m):
    return (x + m - 1) // m * m


def _pick_tile(m, cap=512, align=16):
    """Largest tile <= cap, multiple of `align`, dividing round_up(m, align) evenly."""
    mp = _round_up(m, align)
    t = min(cap, mp)
    t -= t % align
    while t > align:
        if mp % t == 0:
            return t, mp
        t -= align
    return align, mp


# ---------------- Pallas GEMM (conv hot path) with fused BN statistics ----------------

def _matmul_stats_kernel(a_ref, b_ref, o_ref, sum_ref, sq_ref, acc_ref):
    @pl.when(pl.program_id(2) == 0)
    def _():
        acc_ref[...] = jnp.zeros_like(acc_ref)

    acc_ref[...] += jnp.dot(a_ref[...], b_ref[...],
                            preferred_element_type=jnp.float32)

    @pl.when(pl.program_id(2) == pl.num_programs(2) - 1)
    def _():
        acc = acc_ref[...]
        o_ref[...] = acc.astype(o_ref.dtype)
        # per-(row-tile, col-tile) column sums / sums of squares for BatchNorm stats
        sum_ref[...] = jnp.sum(acc, axis=0).reshape(1, 1, acc.shape[1])
        sq_ref[...] = jnp.sum(acc * acc, axis=0).reshape(1, 1, acc.shape[1])


@functools.lru_cache(maxsize=None)
def _matmul_callable(Mp, Kp, Np, tm, tn, tk):
    mt = Mp // tm
    f = pl.pallas_call(
        _matmul_stats_kernel,
        out_shape=(jax.ShapeDtypeStruct((Mp, Np), jnp.bfloat16),
                   jax.ShapeDtypeStruct((mt, 1, Np), jnp.float32),
                   jax.ShapeDtypeStruct((mt, 1, Np), jnp.float32)),
        grid_spec=pltpu.PrefetchScalarGridSpec(
            num_scalar_prefetch=0,
            grid=(mt, Np // tn, Kp // tk),
            in_specs=[pl.BlockSpec((tm, tk), lambda i, j, k: (i, k)),
                      pl.BlockSpec((tk, tn), lambda i, j, k: (k, j))],
            out_specs=[pl.BlockSpec((tm, tn), lambda i, j, k: (i, j)),
                       pl.BlockSpec((1, 1, tn), lambda i, j, k: (i, 0, j)),
                       pl.BlockSpec((1, 1, tn), lambda i, j, k: (i, 0, j))],
            scratch_shapes=[pltpu.VMEM((tm, tn), jnp.float32)]),
        compiler_params=pltpu.CompilerParams(
            dimension_semantics=("parallel", "parallel", "arbitrary"),
            vmem_limit_bytes=_VMEM_LIMIT),
    )
    return jax.jit(f)


def pallas_matmul_stats(a, b):
    """a: [M, K] bf16 patches, b: [K, N] bf16 weights (K already a multiple of 16).

    Returns (y [M, N] bf16, col_sum [N] f32, col_sumsq [N] f32)."""
    M, K = a.shape
    K2, N = b.shape
    assert K == K2
    tm, Mp = _pick_tile(M, 512, 16)
    if N < 128:
        tn, Np = N, N                       # full-extent lane dim (e.g. C_out=64)
    elif N % 256 == 0:
        tn, Np = 256, N                     # 256-aligned for the 256-wide MXU
    elif N % 128 == 0:
        tn, Np = 128, N
    else:
        tn, Np = 128, _round_up(N, 128)
    if K <= 2304:
        tk, Kp = K, K                       # single full-extent k block
    else:
        tk, Kp = _pick_tile(K, 512, 128)
    if Mp != M:
        a = jnp.pad(a, ((0, Mp - M), (0, 0)))
    if Kp != K:
        a = jnp.pad(a, ((0, 0), (0, Kp - K)))
        b = jnp.pad(b, ((0, Kp - K), (0, 0)))
    if Np != N:
        b = jnp.pad(b, ((0, 0), (0, Np - N)))
    y, s1, s2 = _matmul_callable(Mp, Kp, Np, tm, tn, tk)(a, b)
    col_sum = jnp.sum(s1, axis=(0, 1))[:N]
    col_sq = jnp.sum(s2, axis=(0, 1))[:N]
    if Mp != M or Np != N:
        y = y[:M, :N]
    return y, col_sum, col_sq


# ---------------- fused BN-apply (+ residual + ReLU) elementwise kernels ----------------

def _affine_relu_kernel(y_ref, s_ref, b_ref, o_ref):
    o_ref[...] = jnp.maximum(y_ref[...] * s_ref[...] + b_ref[...], 0.0).astype(o_ref.dtype)


def _affine_kernel(y_ref, s_ref, b_ref, o_ref):
    o_ref[...] = (y_ref[...] * s_ref[...] + b_ref[...]).astype(o_ref.dtype)


def _affine_res_relu_kernel(y_ref, s_ref, b_ref, r_ref, o_ref):
    v = y_ref[...] * s_ref[...] + b_ref[...] + r_ref[...]
    o_ref[...] = jnp.maximum(v, 0.0).astype(o_ref.dtype)


def _affine_res_kernel(y_ref, s_ref, b_ref, r_ref, o_ref):
    o_ref[...] = (y_ref[...] * s_ref[...] + b_ref[...] + r_ref[...]).astype(o_ref.dtype)


@functools.lru_cache(maxsize=None)
def _bn_apply_callable(Mp, C, has_res, relu, tm):
    if has_res:
        kernel = _affine_res_relu_kernel if relu else _affine_res_kernel
    else:
        kernel = _affine_relu_kernel if relu else _affine_kernel
    in_specs = [pl.BlockSpec((tm, C), lambda i: (i, 0)),
                pl.BlockSpec((1, C), lambda i: (0, 0)),
                pl.BlockSpec((1, C), lambda i: (0, 0))]
    if has_res:
        in_specs.append(pl.BlockSpec((tm, C), lambda i: (i, 0)))
    f = pl.pallas_call(
        kernel,
        out_shape=jax.ShapeDtypeStruct((Mp, C), jnp.bfloat16),
        grid=(Mp // tm,),
        in_specs=in_specs,
        out_specs=pl.BlockSpec((tm, C), lambda i: (i, 0)),
        compiler_params=pltpu.CompilerParams(
            dimension_semantics=("parallel",),
            vmem_limit_bytes=_VMEM_LIMIT),
    )
    return jax.jit(f)


def batchnorm_apply(y, col_sum, col_sq, m_rows, gamma, beta,
                    residual=None, relu=False, eps=1e-5):
    """Training-mode BatchNorm2d on NHWC rows [M, C] using the GEMM-fused column
    sums (mean / biased variance over the batch), with optional fused residual
    add and ReLU.  Output is bf16; all math is f32."""
    M, C = y.shape
    mean = col_sum / m_rows
    var = jnp.maximum(col_sq / m_rows - mean * mean, 0.0)
    inv = jax.lax.rsqrt(var + eps)
    scale = (gamma * inv).astype(jnp.float32)
    bias = (beta - mean * gamma * inv).astype(jnp.float32)

    # Lane-fold C<128 slabs (C=64 -> 128 lanes) to avoid masked partial stores.
    fold = 128 // C if (C < 128 and 128 % C == 0 and M % (128 // C) == 0) else 1
    Cw, Mf = C * fold, M // fold
    scale = jnp.tile(scale, fold).reshape(1, Cw)
    bias = jnp.tile(bias, fold).reshape(1, Cw)
    tm, Mfp = _pick_tile(Mf, 1024, 16)

    yf = y.reshape(Mf, Cw)
    if Mfp != Mf:
        yf = jnp.pad(yf, ((0, Mfp - Mf), (0, 0)))
    args = [yf, scale, bias]
    if residual is not None:
        rf = residual.astype(jnp.bfloat16).reshape(Mf, Cw)
        if Mfp != Mf:
            rf = jnp.pad(rf, ((0, Mfp - Mf), (0, 0)))
        args.append(rf)
    out = _bn_apply_callable(Mfp, Cw, residual is not None, relu, tm)(*args)
    if Mfp != Mf:
        out = out[:Mf]
    return out.reshape(M, C)


# ---------------- Pallas max-pool (max over 9 shifted NHWC window slabs) ----------------

@functools.lru_cache(maxsize=None)
def _maxk_callable(Mp, C, n, tm):
    def kernel(*refs):
        ins, o_ref = refs[:n], refs[n]
        out = ins[0][...].astype(jnp.float32)
        for r in ins[1:]:
            out = jnp.maximum(out, r[...].astype(jnp.float32))
        o_ref[...] = out.astype(o_ref.dtype)

    f = pl.pallas_call(
        kernel,
        out_shape=jax.ShapeDtypeStruct((Mp, C), jnp.bfloat16),
        grid=(Mp // tm,),
        in_specs=[pl.BlockSpec((tm, C), lambda i: (i, 0)) for _ in range(n)],
        out_specs=pl.BlockSpec((tm, C), lambda i: (i, 0)),
        compiler_params=pltpu.CompilerParams(
            dimension_semantics=("parallel",),
            vmem_limit_bytes=_VMEM_LIMIT),
    )
    return jax.jit(f)


def maxpool2d_nhwc(x, k=3, stride=2, pad=1):
    N, H, W, C = x.shape
    Ho = (H + 2 * pad - k) // stride + 1
    Wo = (W + 2 * pad - k) // stride + 1
    neg = float(jnp.finfo(x.dtype).min)
    xp = jnp.pad(x, ((0, 0), (pad, pad), (pad, pad), (0, 0)), constant_values=neg)
    M = N * Ho * Wo
    fold = 128 // C if (C < 128 and 128 % C == 0 and M % (128 // C) == 0) else 1
    Cw, Mf = C * fold, M // fold
    tm, Mfp = _pick_tile(Mf, 1024, 16)
    slabs = []
    for dy in range(k):
        for dx in range(k):
            sl = xp[:, dy:dy + stride * Ho:stride, dx:dx + stride * Wo:stride, :]
            sl = sl.reshape(Mf, Cw)
            if Mfp != Mf:
                sl = jnp.pad(sl, ((0, Mfp - Mf), (0, 0)))
            slabs.append(sl)
    out = _maxk_callable(Mfp, Cw, k * k, tm)(*slabs)
    if Mfp != Mf:
        out = out[:Mf]
    return out.reshape(N, Ho, Wo, C)


# ---------------- conv via NHWC im2col + Pallas GEMM ----------------

def _im2col_nhwc(x, kh, kw, stride, pad):
    # TODO(synk): taps are gathered by XLA slices/concat (bf16); a fully in-kernel
    # shifted-window DMA would avoid materializing the patch slab in HBM.
    N, H, W, C = x.shape
    Ho = (H + 2 * pad - kh) // stride + 1
    Wo = (W + 2 * pad - kw) // stride + 1
    if pad:
        x = jnp.pad(x, ((0, 0), (pad, pad), (pad, pad), (0, 0)))
    cols = [x[:, dy:dy + stride * Ho:stride, dx:dx + stride * Wo:stride, :]
            for dy in range(kh) for dx in range(kw)]
    K = kh * kw * C
    Kp = _round_up(K, 16)
    if Kp != K:                                  # pad K in-place during the concat
        cols.append(jnp.zeros((N, Ho, Wo, Kp - K), x.dtype))
    pat = jnp.concatenate(cols, axis=-1) if len(cols) > 1 else cols[0]
    return pat.reshape(N * Ho * Wo, Kp), (N, Ho, Wo)


def conv_rows(x_nhwc, w_mat, ksize, stride, pad):
    # x_nhwc: bf16 [N, H, W, C]; w_mat: bf16 [round_up(k*k*C, 16), C_out] (pre-prepared)
    patches, (N, Ho, Wo) = _im2col_nhwc(x_nhwc, ksize, ksize, stride, pad)
    y, cs, cq = pallas_matmul_stats(patches, w_mat)
    return y, cs, cq, (N, Ho, Wo)


# ---------------- fused global avg-pool (7x7) + fc head ----------------

@functools.lru_cache(maxsize=None)
def _head_callable(N, HW, C, nc):
    def kernel(x_ref, w_ref, b_ref, o_ref):
        xm = jnp.mean(x_ref[...].astype(jnp.float32), axis=1)   # F.avg_pool2d(x, 7)
        o_ref[...] = jnp.dot(xm, w_ref[...],
                             preferred_element_type=jnp.float32) + b_ref[...]

    f = pl.pallas_call(
        kernel,
        out_shape=jax.ShapeDtypeStruct((N, nc), jnp.float32),
        grid=(1,),
        in_specs=[pl.BlockSpec((N, HW, C), lambda i: (0, 0, 0)),
                  pl.BlockSpec((C, nc), lambda i: (0, 0)),
                  pl.BlockSpec((1, nc), lambda i: (0, 0))],
        out_specs=pl.BlockSpec((N, nc), lambda i: (0, 0)),
        compiler_params=pltpu.CompilerParams(vmem_limit_bytes=_VMEM_LIMIT),
    )
    return jax.jit(f)


def head_avgpool_fc(x_nhwc, fc_wt, fc_b):
    N, H, W, C = x_nhwc.shape
    xr = x_nhwc.reshape(N, H * W, C)                       # free reshape (NHWC rows)
    return _head_callable(N, H * W, C, fc_wt.shape[1])(xr, fc_wt, fc_b.reshape(1, -1))


# ---------------- ResNet forward ----------------

def residual_block(x_nhwc, blk):
    s = blk['stride']
    N, H, W, Cin = x_nhwc.shape
    y1, cs1, cq1, (_, Ho, Wo) = conv_rows(x_nhwc, blk['conv1_w'], 3, s, 1)
    M = N * Ho * Wo
    o1 = batchnorm_apply(y1, cs1, cq1, M, *blk['bn1'], relu=True)
    y2, cs2, cq2, _ = conv_rows(o1.reshape(N, Ho, Wo, -1), blk['conv2_w'], 3, 1, 1)
    if blk['shortcut'] is None:
        res = x_nhwc.reshape(M, Cin)
    else:
        sw, (sg, sb) = blk['shortcut']
        r, rs, rq, _ = conv_rows(x_nhwc, sw, 1, s, 0)
        res = batchnorm_apply(r, rs, rq, M, sg, sb, relu=False)
    out = batchnorm_apply(y2, cs2, cq2, M, *blk['bn2'], residual=res, relu=True)
    return out.reshape(N, Ho, Wo, -1)


def resnet_forward(x_nchw, params):
    # One-time NCHW -> NHWC (+ bf16 cast); everything downstream stays NHWC rows.
    x = jnp.transpose(x_nchw, (0, 2, 3, 1)).astype(jnp.bfloat16)
    # pre: conv7x7/2 -> BN -> ReLU -> maxpool3x3/2
    y, cs, cq, (N, Ho, Wo) = conv_rows(x, params['pre_conv_w'], 7, 2, 3)
    h = batchnorm_apply(y, cs, cq, N * Ho * Wo, *params['pre_bn'], relu=True)
    h = maxpool2d_nhwc(h.reshape(N, Ho, Wo, -1), k=3, stride=2, pad=1)
    for stage in params['stages']:
        for blk in stage:
            h = residual_block(h, blk)
    return head_avgpool_fc(h, params['fc_wt'], params['fc_b'])


# ---------------- deterministic synthetic parameters (pre-prepared weights) ----------------

def _prep_conv_weight(w):
    # PyTorch layout [O, I, kh, kw] -> im2col matrix [round_up(kh*kw*I, 16), O], bf16,
    # with K ordered (kh, kw, I) to match the NHWC patch layout.  Done once at init.
    O, I, kh, kw = w.shape
    wm = jnp.transpose(w, (2, 3, 1, 0)).reshape(kh * kw * I, O)
    K = kh * kw * I
    Kp = _round_up(K, 16)
    if Kp != K:
        wm = jnp.pad(wm, ((0, Kp - K), (0, 0)))
    return wm.astype(jnp.bfloat16)


def init_params(key, num_classes=1000):
    cnt = [0]

    def nk():
        k = jax.random.fold_in(key, cnt[0])
        cnt[0] += 1
        return k

    def conv_w(o, i, k):
        w = jax.random.normal(nk(), (o, i, k, k), jnp.float32) / ((i * k * k) ** 0.5)
        return _prep_conv_weight(w)

    def bn_p(c):
        g = 1.0 + 0.1 * jax.random.normal(nk(), (c,), jnp.float32)
        b = 0.1 * jax.random.normal(nk(), (c,), jnp.float32)
        return (g, b)

    params = dict(pre_conv_w=conv_w(64, 3, 7), pre_bn=bn_p(64))
    cfg = [(64, 64, 3, 1), (64, 128, 4, 2), (128, 256, 6, 2), (256, 512, 3, 2)]
    stages = []
    for cin, cout, nblocks, stride in cfg:
        blocks = []
        for bi in range(nblocks):
            s = stride if bi == 0 else 1
            ci = cin if bi == 0 else cout
            blocks.append(dict(
                stride=s,
                conv1_w=conv_w(cout, ci, 3), bn1=bn_p(cout),
                conv2_w=conv_w(cout, cout, 3), bn2=bn_p(cout),
                # _make_layer always gives the FIRST block a 1x1-conv+BN shortcut
                shortcut=(conv_w(cout, ci, 1), bn_p(cout)) if bi == 0 else None))
        stages.append(blocks)
    params['stages'] = stages
    fc_w = jax.random.normal(nk(), (num_classes, 512), jnp.float32) / (512.0 ** 0.5)
    params['fc_wt'] = fc_w.T                           # pre-transposed [512, num_classes]
    params['fc_b'] = 0.01 * jax.random.normal(nk(), (num_classes,), jnp.float32)
    return params


if __name__ == "__main__":
    # avg_pool2d(x, 7) + flatten-to-512 forces a 224x224 input; keep batch small.
    num_classes = 10
    x = jax.random.normal(jax.random.PRNGKey(0), (2, 3, 224, 224), jnp.float32)
    params = init_params(jax.random.PRNGKey(1), num_classes=num_classes)
    logits = resnet_forward(x, params)
    logits = jax.block_until_ready(logits)
    assert logits.shape == (2, num_classes)
    assert bool(jnp.all(jnp.isfinite(logits)))
    print("KERNEL_OK")
</pallas_src>

<mosaic_0001>
module attributes {stable_mosaic.version = 11 : i64} {
  func.func @_matmul_stats_kernel(%arg0: i32, %arg1: i32, %arg2: i32, %arg3: memref<512x160xbf16, #tpu.memory_space<vmem>>, %arg4: memref<160x64xbf16, #tpu.memory_space<vmem>>, %arg5: memref<512x64xbf16, #tpu.memory_space<vmem>>, %arg6: memref<1x1x64xf32, #tpu.memory_space<vmem>>, %arg7: memref<1x1x64xf32, #tpu.memory_space<vmem>>, %arg8: memref<512x64xf32, #tpu.memory_space<vmem>>) attributes {dimension_semantics = [#tpu.dimension_semantics<parallel>, #tpu.dimension_semantics<parallel>, #tpu.dimension_semantics<arbitrary>], iteration_bounds = array<i64: 49, 1, 1>, scalar_prefetch = 0 : i64, scratch_operands = 1 : i64, tpu.core_type = #tpu.core_type<tc>, window_params = [{transform_indices = @transform_0, window_bounds = array<i64: 512, 160>}, {transform_indices = @transform_1, window_bounds = array<i64: 160, 64>}, {transform_indices = @transform_2, window_bounds = array<i64: 512, 64>}, {transform_indices = @transform_3, window_bounds = array<i64: 1, 1, 64>}, {transform_indices = @transform_4, window_bounds = array<i64: 1, 1, 64>}]} {
    %c0_i32 = arith.constant 0 : i32
    %0 = arith.cmpi eq, %arg2, %c0_i32 : i32
    %1 = arith.extui %0 : i1 to i32
    %c0_i32_0 = arith.constant 0 : i32
    %2 = arith.cmpi ne, %1, %c0_i32_0 : i32
    scf.if %2 {
      %cst_10 = arith.constant 0.000000e+00 : f32
      %12 = vector.broadcast %cst_10 : f32 to vector<512x64xf32>
      %c0_11 = arith.constant 0 : index
      %c0_12 = arith.constant 0 : index
      %13 = vector.load %arg8[%c0_11, %c0_12] : memref<512x64xf32, #tpu.memory_space<vmem>>, vector<512x64xf32>
      tpu.vector_store %arg8[%c0_11, %c0_12], %12 {strides = array<i32>} : memref<512x64xf32, #tpu.memory_space<vmem>>, vector<512x64xf32>,
    } else {
    }
    %c0 = arith.constant 0 : index
    %c0_1 = arith.constant 0 : index
    %3 = vector.load %arg8[%c0, %c0_1] : memref<512x64xf32, #tpu.memory_space<vmem>>, vector<512x64xf32>
    %c0_2 = arith.constant 0 : index
    %c0_3 = arith.constant 0 : index
    %4 = vector.load %arg3[%c0_2, %c0_3] : memref<512x160xbf16, #tpu.memory_space<vmem>>, vector<512x160xbf16>
    %c0_4 = arith.constant 0 : index
    %c0_5 = arith.constant 0 : index
    %5 = vector.load %arg4[%c0_4, %c0_5] : memref<160x64xbf16, #tpu.memory_space<vmem>>, vector<160x64xbf16>
    %cst = arith.constant dense<0.000000e+00> : vector<512x64xf32>
    %6 = tpu.matmul %4, %5, %cst {dimension_numbers = #tpu.dot_dimension_numbers<[1], [0], [0], [1], [0, 0, 1, 1], [], []>} : vector<512x160xbf16>, vector<160x64xbf16>, vector<512x64xf32> -> vector<512x64xf32>
    %7 = arith.addf %3, %6 : vector<512x64xf32>
    %c0_6 = arith.constant 0 : index
    %c0_7 = arith.constant 0 : index
    %8 = vector.load %arg8[%c0_6, %c0_7] : memref<512x64xf32, #tpu.memory_space<vmem>>, vector<512x64xf32>
    tpu.vector_store %arg8[%c0_6, %c0_7], %7 {strides = array<i32>} : memref<512x64xf32, #tpu.memory_space<vmem>>, vector<512x64xf32>,
    %c0_i32_8 = arith.constant 0 : i32
    %9 = arith.cmpi eq, %arg2, %c0_i32_8 : i32
    %10 = arith.extui %9 : i1 to i32
    %c0_i32_9 = arith.constant 0 : i32
    %11 = arith.cmpi ne, %10, %c0_i32_9 : i32
    scf.if %11 {
      %c0_10 = arith.constant 0 : index
      %c0_11 = arith.constant 0 : index
      %12 = vector.load %arg8[%c0_10, %c0_11] : memref<512x64xf32, #tpu.memory_space<vmem>>, vector<512x64xf32>
      %13 = arith.truncf %12 : vector<512x64xf32> to vector<512x64xbf16>
      %c0_12 = arith.constant 0 : index
      %c0_13 = arith.constant 0 : index
      %14 = vector.load %arg5[%c0_12, %c0_13] : memref<512x64xbf16, #tpu.memory_space<vmem>>, vector<512x64xbf16>
      tpu.vector_store %arg5[%c0_12, %c0_13], %13 {strides = array<i32>} : memref<512x64xbf16, #tpu.memory_space<vmem>>, vector<512x64xbf16>,
      %cst_14 = arith.constant dense<0.000000e+00> : vector<64xf32>
      %15 = vector.multi_reduction <add>, %12, %cst_14 [0] : vector<512x64xf32> to vector<64xf32>
      %16 = vector.shape_cast %15 : vector<64xf32> to vector<1x1x64xf32>
      %c0_15 = arith.constant 0 : index
      %c0_16 = arith.constant 0 : index
      %c0_17 = arith.constant 0 : index
      %17 = vector.load %arg6[%c0_15, %c0_16, %c0_17] : memref<1x1x64xf32, #tpu.memory_space<vmem>>, vector<1x1x64xf32>
      tpu.vector_store %arg6[%c0_15, %c0_16, %c0_17], %16 {strides = array<i32>} : memref<1x1x64xf32, #tpu.memory_space<vmem>>, vector<1x1x64xf32>,
      %18 = arith.mulf %12, %12 : vector<512x64xf32>
      %cst_18 = arith.constant dense<0.000000e+00> : vector<64xf32>
      %19 = vector.multi_reduction <add>, %18, %cst_18 [0] : vector<512x64xf32> to vector<64xf32>
      %20 = vector.shape_cast %19 : vector<64xf32> to vector<1x1x64xf32>
      %c0_19 = arith.constant 0 : index
      %c0_20 = arith.constant 0 : index
      %c0_21 = arith.constant 0 : index
      %21 = vector.load %arg7[%c0_19, %c0_20, %c0_21] : memref<1x1x64xf32, #tpu.memory_space<vmem>>, vector<1x1x64xf32>
      tpu.vector_store %arg7[%c0_19, %c0_20, %c0_21], %20 {strides = array<i32>} : memref<1x1x64xf32, #tpu.memory_space<vmem>>, vector<1x1x64xf32>,
    } else {
    }
    return
  }
  func.func @transform_0(%arg0: i32, %arg1: i32, %arg2: i32) -> (i32, i32) {
    %c0_i32 = arith.constant 0 : i32
    return %arg0, %arg2 : i32, i32
  }
  func.func @transform_1(%arg0: i32, %arg1: i32, %arg2: i32) -> (i32, i32) {
    %c0_i32 = arith.constant 0 : i32
    return %arg2, %arg1 : i32, i32
  }
  func.func @transform_2(%arg0: i32, %arg1: i32, %arg2: i32) -> (i32, i32) {
    %c0_i32 = arith.constant 0 : i32
    return %arg0, %arg1 : i32, i32
  }
  func.func @transform_3(%arg0: i32, %arg1: i32, %arg2: i32) -> (i32, i32, i32) {
    %c0_i32 = arith.constant 0 : i32
    %c0_i32_0 = arith.constant 0 : i32
    return %arg0, %c0_i32, %arg1 : i32, i32, i32
  }
  func.func @transform_4(%arg0: i32, %arg1: i32, %arg2: i32) -> (i32, i32, i32) {
    %c0_i32 = arith.constant 0 : i32
    %c0_i32_0 = arith.constant 0 : i32
    return %arg0, %c0_i32, %arg1 : i32, i32, i32
  }
}

</mosaic_0001>

<llo_original>
// kernel: tpu_custom_call.1
$region0: #{tpu_custom_call.1}
  #allocation0 [shape = 'u32[]', space=smem, size = 0x4, offset = 0x4, fixed_abs, tag = 'smem constant byte address 0x4 - core index']
  #allocation1 [shape = 'u32[144,128]{1,0:T(1,128)}', space=vmem, size = 0x12000, scoped, tag = 'internal scratch']
  #allocation2 [shape = 'f32[512,64]{1,0:T(8,128)}', space=vmem, size = 0x40000, scoped, tag = 'scratch operand']
  %s0 = inlined_call_operand.vmem [shape: bf16[25088,160], index: 0, kind: input, shape index: {}]
  %s1 = inlined_call_operand.vmem [shape: bf16[160,64], index: 1, kind: input, shape index: {}]
  %s2 = inlined_call_operand.vmem [shape: bf16[25088,64], index: 2, kind: output, shape index: {0}]
  %s3 = inlined_call_operand.hbm [shape: f32[49,1,64], index: 3, kind: output, shape index: {1}]
  %s4 = inlined_call_operand.hbm [shape: f32[49,1,64], index: 4, kind: output, shape index: {2}]
  %5 = xla_tuple %s2, %s3, %s4
  %s6 = sld [smem:[#allocation0]]
  $region65: #{tpu_custom_call.1} parent=0
    _
  %s8 = ssub.s32 1, %s6
  %s9 = scalar_select 0, %s8, %s6
  $region1: #{tpu_custom_call.1} parent=0
    #allocation3 [shape = 'u8[1024]{0}', space=vmem, size = 0x400, scoped, tag = 'output window, operand 1']
    #allocation4 [shape = 's32[2]{0}', space=sflag, size = 0x8, scoped, tag = 'scoped memory for tpu_custom_call.1']
    #allocation5 [shape = 'u8[1024]{0}', space=vmem, size = 0x400, scoped, tag = 'output window, operand 2']
    #allocation6 [shape = 's32[2]{0}', space=sflag, size = 0x8, scoped, tag = 'scoped memory for tpu_custom_call.1']
    %10 = vsyncpa [#allocation4], 0
    %s11 = scalar_lea.sflag [#allocation4], 1
    %12 = vsyncpa %s11, 0
    %13 = vsyncpa [#allocation6], 0
    %s14 = scalar_lea.sflag [#allocation6], 1
    %15 = vsyncpa %s14, 0
    loop: start=0, step=1, limit=51
    $region2: #{tpu_custom_call.1} parent=1 // loop_pre_header
      _
    $region3: #{tpu_custom_call.1} parent=1 // loop_header
      %s17 = sphi 0, %s21
      %p18 = scmp.ge.s32.totalorder %s17, 51
      %s24 = sphi 0, %s43
      %s25 = sphi 0, %s39
      %s26 = sphi 0, %s35
      %s27 = sphi 0, %s24
      %s28 = sphi 0, %s25
      %s29 = sphi 0, %s26
      %s30 = sphi 0, %s27
      %s31 = sphi 0, %s28
      %s32 = sphi 0, %s29
      %s48 = sphi 0, %s50
      %s51 = sphi 0, %s48
      %s52 = sphi 0, %s51
      %s68 = sphi 0, %s52
      %s76 = sphi 0, %s78
      %s79 = sphi 0, %s76
      %s80 = sphi 0, %s79
      %s96 = sphi 0, %s80
      %s104 = sphi 0, %s106
      %s107 = sphi 0, %s104
      %s108 = sphi 0, %s107
      %s124 = sphi 0, %s108
      %s132 = sphi 0, %s134
      %s135 = sphi 0, %s132
      %s136 = sphi 0, %s135
      %s152 = sphi 0, %s136
      %s160 = sphi 0, %s162
      %s163 = sphi 0, %s160
      %s164 = sphi 0, %s163
      %s180 = sphi 0, %s164
    $region4: #{tpu_custom_call.1} parent=1 // loop_header_branch
      %20 = sbr.rel (%p18) target = $region8
    $region5: #{tpu_custom_call.1} parent=1 // loop_body
      %s22 = ssub.s32 %s17, 1
      %s23 = ssub.s32 %s17, 2
      %s33 = sadd.s32 1, %s26
      %p34 = scmp.ge.s32.totalorder %s33, 1
      %s35 = scalar_select %p34, 0, %s33
      %s36 = sadd.s32 1, %s25
      %s37 = scalar_select %p34, %s36, %s25
      %p38 = scmp.ge.s32.totalorder %s37, 1
      %s39 = scalar_select %p38, 0, %s37
      %s40 = sadd.s32 1, %s24
      %s41 = scalar_select %p38, %s40, %s24
      %p42 = scmp.ge.s32.totalorder %s41, 49
      %s43 = scalar_select %p42, 0, %s41
      %s44 = ssub.s32 %s24, %s43
      %s45 = ssub.s32 %s26, %s35
      %s46 = sor.u32 %s44, %s45
      %p47 = scmp.eq.s32.totalorder %s46, 0
      %s49 = sadd.s32 %s48, 1
      %s50 = scalar_select %p47, %s48, %s49
      %p53 = pneg %p47
      %p54 = scmp.eq.s32.totalorder %s17, 48
      %p55 = por %p53, %p54
      %p56 = scmp.ne.s32.totalorder %s48, %s51
      %p57 = scmp.eq.s32.totalorder %s17, 0
      %p58 = por %p56, %p57
      %p59 = scmp.ne.s32.totalorder %s48, %s51
      %p60 = scmp.eq.s32.totalorder %s22, 48
      %p61 = por %p59, %p60
      %p62 = scmp.ne.s32.totalorder %s51, %s52
      %p63 = scmp.eq.s32.totalorder %s22, 0
      %p64 = por %p62, %p63
      %p65 = scmp.ne.s32.totalorder %s51, %s52
      %p66 = scmp.eq.s32.totalorder %s23, 48
      %p67 = por %p65, %p66
      %p69 = scmp.ne.s32.totalorder %s52, %s68
      %p70 = scmp.eq.s32.totalorder %s23, 0
      %p71 = por %p69, %p70
      %s72 = ssub.s32 %s26, %s35
      %s73 = ssub.s32 %s25, %s39
      %s74 = sor.u32 %s72, %s73
      %p75 = scmp.eq.s32.totalorder %s74, 0
      %s77 = sadd.s32 %s76, 1
      %s78 = scalar_select %p75, %s76, %s77
      %p81 = pneg %p75
      %p82 = scmp.eq.s32.totalorder %s17, 48
      %p83 = por %p81, %p82
      %p84 = scmp.ne.s32.totalorder %s76, %s79
      %p85 = scmp.eq.s32.totalorder %s17, 0
      %p86 = por %p84, %p85
      %p87 = scmp.ne.s32.totalorder %s76, %s79
      %p88 = scmp.eq.s32.totalorder %s22, 48
      %p89 = por %p87, %p88
      %p90 = scmp.ne.s32.totalorder %s79, %s80
      %p91 = scmp.eq.s32.totalorder %s22, 0
      %p92 = por %p90, %p91
      %p93 = scmp.ne.s32.totalorder %s79, %s80
      %p94 = scmp.eq.s32.totalorder %s23, 48
      %p95 = por %p93, %p94
      %p97 = scmp.ne.s32.totalorder %s80, %s96
      %p98 = scmp.eq.s32.totalorder %s23, 0
      %p99 = por %p97, %p98
      %s100 = ssub.s32 %s24, %s43
      %s101 = ssub.s32 %s25, %s39
      %s102 = sor.u32 %s100, %s101
      %p103 = scmp.eq.s32.totalorder %s102, 0
      %s105 = sadd.s32 %s104, 1
      %s106 = scalar_select %p103, %s104, %s105
      %p109 = pneg %p103
      %p110 = scmp.eq.s32.totalorder %s17, 48
      %p111 = por %p109, %p110
      %p112 = scmp.ne.s32.totalorder %s104, %s107
      %p113 = scmp.eq.s32.totalorder %s17, 0
      %p114 = por %p112, %p113
      %p115 = scmp.ne.s32.totalorder %s104, %s107
      %p116 = scmp.eq.s32.totalorder %s22, 48
      %p117 = por %p115, %p116
      %p118 = scmp.ne.s32.totalorder %s107, %s108
      %p119 = scmp.eq.s32.totalorder %s22, 0
      %p120 = por %p118, %p119
      %p121 = scmp.ne.s32.totalorder %s107, %s108
      %p122 = scmp.eq.s32.totalorder %s23, 48
      %p123 = por %p121, %p122
      %p125 = scmp.ne.s32.totalorder %s108, %s124
      %p126 = scmp.eq.s32.totalorder %s23, 0
      %p127 = por %p125, %p126
      %s128 = ssub.s32 %s24, %s43
      %s129 = ssub.s32 %s25, %s39
      %s130 = sor.u32 %s128, %s129
      %p131 = scmp.eq.s32.totalorder %s130, 0
      %s133 = sadd.s32 %s132, 1
      %s134 = scalar_select %p131, %s132, %s133
      %p137 = pneg %p131
      %p138 = scmp.eq.s32.totalorder %s17, 48
      %p139 = por %p137, %p138
      %p140 = scmp.ne.s32.totalorder %s132, %s135
      %p141 = scmp.eq.s32.totalorder %s17, 0
      %p142 = por %p140, %p141
      %p143 = scmp.ne.s32.totalorder %s132, %s135
      %p144 = scmp.eq.s32.totalorder %s22, 48
      %p145 = por %p143, %p144
      %p146 = scmp.ne.s32.totalorder %s135, %s136
      %p147 = scmp.eq.s32.totalorder %s22, 0
      %p148 = por %p146, %p147
      %p149 = scmp.ne.s32.totalorder %s135, %s136
      %p150 = scmp.eq.s32.totalorder %s23, 48
      %p151 = por %p149, %p150
      %p153 = scmp.ne.s32.totalorder %s136, %s152
      %p154 = scmp.eq.s32.totalorder %s23, 0
      %p155 = por %p153, %p154
      %s156 = ssub.s32 %s24, %s43
      %s157 = ssub.s32 %s25, %s39
      %s158 = sor.u32 %s156, %s157
      %p159 = scmp.eq.s32.totalorder %s158, 0
      %s161 = sadd.s32 %s160, 1
      %s162 = scalar_select %p159, %s160, %s161
      %p165 = pneg %p159
      %p166 = scmp.eq.s32.totalorder %s17, 48
      %p167 = por %p165, %p166
      %p168 = scmp.ne.s32.totalorder %s160, %s163
      %p169 = scmp.eq.s32.totalorder %s17, 0
      %p170 = por %p168, %p169
      %p171 = scmp.ne.s32.totalorder %s160, %s163
      %p172 = scmp.eq.s32.totalorder %s22, 48
      %p173 = por %p171, %p172
      %p174 = scmp.ne.s32.totalorder %s163, %s164
      %p175 = scmp.eq.s32.totalorder %s22, 0
      %p176 = por %p174, %p175
      %p177 = scmp.ne.s32.totalorder %s163, %s164
      %p178 = scmp.eq.s32.totalorder %s23, 48
      %p179 = por %p177, %p178
      %p181 = scmp.ne.s32.totalorder %s164, %s180
      %p182 = scmp.eq.s32.totalorder %s23, 0
      %p183 = por %p181, %p182
      %p184 = scmp.le.s32.totalorder 1, %s17
      %p185 = scmp.lt.s32.totalorder %s17, 50
      %p186 = pnand %p184, %p185
      %p187 = pneg %p186
      // Predicated region
      $region9: #{tpu_custom_call.1} parent=5 // pred_check
        _
      $region10: #{tpu_custom_call.1} parent=5 // pred_check_branch
        %189 = sbr.rel (%p186) target = $region12
      $region11: #{tpu_custom_call.1} parent=5 // pred_region
        %s190 = ssub.s32 %s17, 1
        // Predicated region
        $region13: #{tpu_custom_call.1} parent=11 // pred_check
          %p191 = pneg %p92
        $region14: #{tpu_custom_call.1} parent=11 // pred_check_branch
          %193 = sbr.rel (%p191) target = $region16
        $region15: #{tpu_custom_call.1} parent=11 // pred_region
          %s194 = smul.u32 20, %s29
          %p195 = scmp.lt.s32.totalorder %s194, 19
          %s196 = scalar_select %p195, %s194, 19
          %p197 = scmp.lt.s32.totalorder %s28, 0
          %s198 = scalar_select %p197, %s28, 0
          %s199 = sadd.s32 %s198, %s196
          %s200 = smul.addr %s199, 4
          %s201 = scalar_lea.vmem %s1, %s200
          %s202 = smul.u32 20, %s29
        $region16: #{tpu_custom_call.1} parent=11 // pred_fallthru
          _
      $region12: #{tpu_custom_call.1} parent=5 // pred_fallthru
        _
      %p203 = scmp.lt.s32.totalorder %s17, 49
      // Predicated region
      $region17: #{tpu_custom_call.1} parent=5 // pred_check
        %p204 = pneg %p203
      $region18: #{tpu_custom_call.1} parent=5 // pred_check_branch
        %206 = sbr.rel (%p204) target = $region20
      $region19: #{tpu_custom_call.1} parent=5 // pred_region
        // Predicated region
        $region21: #{tpu_custom_call.1} parent=19 // pred_check
          %p207 = pneg %p58
        $region22: #{tpu_custom_call.1} parent=19 // pred_check_branch
          %209 = sbr.rel (%p207) target = $region24
        $region23: #{tpu_custom_call.1} parent=19 // pred_region
          %s210 = smul.u32 64, %s24
          %s211 = smul.u32 2, %s26
          %p212 = scmp.lt.s32.totalorder %s210, 3135
          %s213 = scalar_select %p212, %s210, 3135
          %p214 = scmp.lt.s32.totalorder %s211, 1
          %s215 = scalar_select %p214, %s211, 1
          %s216 = smul.addr %s213, 2
          %s217 = sadd.s32 %s215, %s216
          %s218 = smul.addr %s217, 4
          %s219 = scalar_lea.vmem %s0, %s218
          %s220 = smul.u32 64, %s24
          %s221 = smul.u32 2, %s26
        $region24: #{tpu_custom_call.1} parent=19 // pred_fallthru
          _
      $region20: #{tpu_custom_call.1} parent=5 // pred_fallthru
        _
      %p222 = scmp.le.s32.totalorder 1, %s17
      %p223 = scmp.lt.s32.totalorder %s17, 50
      %p224 = pnand %p222, %p223
      %p225 = pneg %p224
      // Predicated region
      $region25: #{tpu_custom_call.1} parent=5 // pred_check
        _
      $region26: #{tpu_custom_call.1} parent=5 // pred_check_branch
        %227 = sbr.rel (%p224) target = $region28
      $region27: #{tpu_custom_call.1} parent=5 // pred_region
        %s228 = ssub.s32 %s17, 1
        %s229 = smul.u32 64, %s27
        %s230 = smul.u32 2, %s29
        %p231 = scmp.lt.s32.totalorder %s229, 3135
        %s232 = scalar_select %p231, %s229, 3135
        %p233 = scmp.lt.s32.totalorder %s230, 1
        %s234 = scalar_select %p233, %s230, 1
        %s235 = smul.addr %s232, 2
        %s236 = sadd.s32 %s234, %s235
        %s237 = smul.addr %s236, 4
        %s238 = scalar_lea.vmem %s0, %s237
        %p239 = pneg %p64
        %p240 = pneg %p61
        %s241 = smul.u32 20, %s29
        %p242 = scmp.lt.s32.totalorder %s241, 19
        %s243 = scalar_select %p242, %s241, 19
        %p244 = scmp.lt.s32.totalorder %s28, 0
        %s245 = scalar_select %p244, %s28, 0
        %s246 = sadd.s32 %s245, %s243
        %s247 = smul.addr %s246, 4
        %s248 = scalar_lea.vmem %s1, %s247
        %p249 = pneg %p92
        %p250 = pneg %p89
        %p251 = pneg %p120
        %p252 = pneg %p117
        %s253 = smul.u32 64, %s27
        %p254 = scmp.lt.s32.totalorder %s253, 3135
        %s255 = scalar_select %p254, %s253, 3135
        %p256 = scmp.lt.s32.totalorder %s28, 0
        %s257 = scalar_select %p256, %s28, 0
        %s258 = sadd.s32 %s257, %s255
        %s259 = smul.addr %s258, 4
        %s260 = scalar_lea.vmem %s2, %s259
        %p261 = pneg %p148
        %p262 = pneg %p145
        %s263 = sand.u32 %s135, 1
        %s264 = scalar_lea.sflag [#allocation4], %s263
        %s265 = sand.u32 %s135, 1
        %s266 = scalar_lea.vmem [#allocation3], %s265
        %p267 = pneg %p176
        %p268 = pneg %p173
        %s269 = sand.u32 %s163, 1
        %s270 = scalar_lea.sflag [#allocation6], %s269
        %s271 = sand.u32 %s163, 1
        %s272 = scalar_lea.vmem [#allocation5], %s271
        %s273 = smul.u32 64, %s27
        %s274 = smul.u32 2, %s29
        %p275 = scmp.lt.s32.totalorder %s273, 3135
        %s276 = scalar_select %p275, %s273, 3135
        %p277 = scmp.lt.s32.totalorder %s274, 1
        %s278 = scalar_select %p277, %s274, 1
        %s279 = smul.addr %s276, 2
        %s280 = sadd.s32 %s278, %s279
        %s281 = smul.addr %s280, 4
        %s282 = scalar_lea.vmem %s0, %s281
        %s283 = smul.u32 64, %s27
        %s284 = smul.u32 2, %s29
        %s285 = smul.u32 20, %s29
        %p286 = scmp.lt.s32.totalorder %s285, 19
        %s287 = scalar_select %p286, %s285, 19
        %p288 = scmp.lt.s32.totalorder %s28, 0
        %s289 = scalar_select %p288, %s28, 0
        %s290 = sadd.s32 %s289, %s287
        %s291 = smul.addr %s290, 4
        %s292 = scalar_lea.vmem %s1, %s291
        %s293 = smul.u32 20, %s29
        %s294 = smul.u32 64, %s27
        %p295 = scmp.lt.s32.totalorder %s294, 3135
        %s296 = scalar_select %p295, %s294, 3135
        %p297 = scmp.lt.s32.totalorder %s28, 0
        %s298 = scalar_select %p297, %s28, 0
        %s299 = sadd.s32 %s298, %s296
        %s300 = smul.addr %s299, 4
        %s301 = scalar_lea.vmem %s2, %s300
        %s302 = smul.u32 64, %s27
        %p304 = scmp.eq.s32.totalorder %s29, 0
        // Predicated region
        $region29: #{tpu_custom_call.1} parent=27 // pred_check
          %p305 = pneg %p304
        $region30: #{tpu_custom_call.1} parent=27 // pred_check_branch
          %307 = sbr.rel (%p305) target = $region32
        $region31: #{tpu_custom_call.1} parent=27 // pred_region
          %vm308 = vcmask 523264
          %309 = vst.msk [vmem:[#allocation2] sm:$0xff] %vm308, 0.0
          %310 = vst.msk [vmem:[#allocation2 + $0x8] sm:$0xff] %vm308, 0.0
          %311 = vst.msk [vmem:[#allocation2 + $0x10] sm:$0xff] %vm308, 0.0
          %312 = vst.msk [vmem:[#allocation2 + $0x18] sm:$0xff] %vm308, 0.0
          %313 = vst.msk [vmem:[#allocation2 + $0x20] sm:$0xff] %vm308, 0.0
          %314 = vst.msk [vmem:[#allocation2 + $0x28] sm:$0xff] %vm308, 0.0
          %315 = vst.msk [vmem:[#allocation2 + $0x30] sm:$0xff] %vm308, 0.0
          %316 = vst.msk [vmem:[#allocation2 + $0x38] sm:$0xff] %vm308, 0.0
          %317 = vst.msk [vmem:[#allocation2 + $0x40] sm:$0xff] %vm308, 0.0
          %318 = vst.msk [vmem:[#allocation2 + $0x48] sm:$0xff] %vm308, 0.0
          %319 = vst.msk [vmem:[#allocation2 + $0x50] sm:$0xff] %vm308, 0.0
          %320 = vst.msk [vmem:[#allocation2 + $0x58] sm:$0xff] %vm308, 0.0
          %321 = vst.msk [vmem:[#allocation2 + $0x60] sm:$0xff] %vm308, 0.0
          %322 = vst.msk [vmem:[#allocation2 + $0x68] sm:$0xff] %vm308, 0.0
          %323 = vst.msk [vmem:[#allocation2 + $0x70] sm:$0xff] %vm308, 0.0
          %324 = vst.msk [vmem:[#allocation2 + $0x78] sm:$0xff] %vm308, 0.0
          %325 = vst.msk [vmem:[#allocation2 + $0x80] sm:$0xff] %vm308, 0.0
          %326 = vst.msk [vmem:[#allocation2 + $0x88] sm:$0xff] %vm308, 0.0
          %327 = vst.msk [vmem:[#allocation2 + $0x90] sm:$0xff] %vm308, 0.0
          %328 = vst.msk [vmem:[#allocation2 + $0x98] sm:$0xff] %vm308, 0.0
          %329 = vst.msk [vmem:[#allocation2 + $0xa0] sm:$0xff] %vm308, 0.0
          %330 = vst.msk [vmem:[#allocation2 + $0xa8] sm:$0xff] %vm308, 0.0
          %331 = vst.msk [vmem:[#allocation2 + $0xb0] sm:$0xff] %vm308, 0.0
          %332 = vst.msk [vmem:[#allocation2 + $0xb8] sm:$0xff] %vm308, 0.0
          %333 = vst.msk [vmem:[#allocation2 + $0xc0] sm:$0xff] %vm308, 0.0
          %334 = vst.msk [vmem:[#allocation2 + $0xc8] sm:$0xff] %vm308, 0.0
          %335 = vst.msk [vmem:[#allocation2 + $0xd0] sm:$0xff] %vm308, 0.0
          %336 = vst.msk [vmem:[#allocation2 + $0xd8] sm:$0xff] %vm308, 0.0
          %337 = vst.msk [vmem:[#allocation2 + $0xe0] sm:$0xff] %vm308, 0.0
          %338 = vst.msk [vmem:[#allocation2 + $0xe8] sm:$0xff] %vm308, 0.0
          %339 = vst.msk [vmem:[#allocation2 + $0xf0] sm:$0xff] %vm308, 0.0
          %340 = vst.msk [vmem:[#allocation2 + $0xf8] sm:$0xff] %vm308, 0.0
          %341 = vst.msk [vmem:[#allocation2 + $0x100] sm:$0xff] %vm308, 0.0
          %342 = vst.msk [vmem:[#allocation2 + $0x108] sm:$0xff] %vm308, 0.0
          %343 = vst.msk [vmem:[#allocation2 + $0x110] sm:$0xff] %vm308, 0.0
          %344 = vst.msk [vmem:[#allocation2 + $0x118] sm:$0xff] %vm308, 0.0
          %345 = vst.msk [vmem:[#allocation2 + $0x120] sm:$0xff] %vm308, 0.0
          %346 = vst.msk [vmem:[#allocation2 + $0x128] sm:$0xff] %vm308, 0.0
          %347 = vst.msk [vmem:[#allocation2 + $0x130] sm:$0xff] %vm308, 0.0
          %348 = vst.msk [vmem:[#allocation2 + $0x138] sm:$0xff] %vm308, 0.0
          %349 = vst.msk [vmem:[#allocation2 + $0x140] sm:$0xff] %vm308, 0.0
          %350 = vst.msk [vmem:[#allocation2 + $0x148] sm:$0xff] %vm308, 0.0
          %351 = vst.msk [vmem:[#allocation2 + $0x150] sm:$0xff] %vm308, 0.0
          %352 = vst.msk [vmem:[#allocation2 + $0x158] sm:$0xff] %vm308, 0.0
          %353 = vst.msk [vmem:[#allocation2 + $0x160] sm:$0xff] %vm308, 0.0
          %354 = vst.msk [vmem:[#allocation2 + $0x168] sm:$0xff] %vm308, 0.0
          %355 = vst.msk [vmem:[#allocation2 + $0x170] sm:$0xff] %vm308, 0.0
          %356 = vst.msk [vmem:[#allocation2 + $0x178] sm:$0xff] %vm308, 0.0
          %357 = vst.msk [vmem:[#allocation2 + $0x180] sm:$0xff] %vm308, 0.0
          %358 = vst.msk [vmem:[#allocation2 + $0x188] sm:$0xff] %vm308, 0.0
          %359 = vst.msk [vmem:[#allocation2 + $0x190] sm:$0xff] %vm308, 0.0
          %360 = vst.msk [vmem:[#allocation2 + $0x198] sm:$0xff] %vm308, 0.0
          %361 = vst.msk [vmem:[#allocation2 + $0x1a0] sm:$0xff] %vm308, 0.0
          %362 = vst.msk [vmem:[#allocation2 + $0x1a8] sm:$0xff] %vm308, 0.0
          %363 = vst.msk [vmem:[#allocation2 + $0x1b0] sm:$0xff] %vm308, 0.0
          %364 = vst.msk [vmem:[#allocation2 + $0x1b8] sm:$0xff] %vm308, 0.0
          %365 = vst.msk [vmem:[#allocation2 + $0x1c0] sm:$0xff] %vm308, 0.0
          %366 = vst.msk [vmem:[#allocation2 + $0x1c8] sm:$0xff] %vm308, 0.0
          %367 = vst.msk [vmem:[#allocation2 + $0x1d0] sm:$0xff] %vm308, 0.0
          %368 = vst.msk [vmem:[#allocation2 + $0x1d8] sm:$0xff] %vm308, 0.0
          %369 = vst.msk [vmem:[#allocation2 + $0x1e0] sm:$0xff] %vm308, 0.0
          %370 = vst.msk [vmem:[#allocation2 + $0x1e8] sm:$0xff] %vm308, 0.0
          %371 = vst.msk [vmem:[#allocation2 + $0x1f0] sm:$0xff] %vm308, 0.0
          %372 = vst.msk [vmem:[#allocation2 + $0x1f8] sm:$0xff] %vm308, 0.0
        $region32: #{tpu_custom_call.1} parent=27 // pred_fallthru
          _
        %v373 = vld [vmem:[#allocation2] sm:$0xff]
        %v374 = vld [vmem:[#allocation2 + $0x8] sm:$0xff]
        %v375 = vld [vmem:[#allocation2 + $0x10] sm:$0xff]
        %v376 = vld [vmem:[#allocation2 + $0x18] sm:$0xff]
        %v377 = vld [vmem:[#allocation2 + $0x20] sm:$0xff]
        %v378 = vld [vmem:[#allocation2 + $0x28] sm:$0xff]
        %v379 = vld [vmem:[#allocation2 + $0x30] sm:$0xff]
        %v380 = vld [vmem:[#allocation2 + $0x38] sm:$0xff]
        %v381 = vld [vmem:[#allocation2 + $0x40] sm:$0xff]
        %v382 = vld [vmem:[#allocation2 + $0x48] sm:$0xff]
        %v383 = vld [vmem:[#allocation2 + $0x50] sm:$0xff]
        %v384 = vld [vmem:[#allocation2 + $0x58] sm:$0xff]
        %v385 = vld [vmem:[#allocation2 + $0x60] sm:$0xff]
        %v386 = vld [vmem:[#allocation2 + $0x68] sm:$0xff]
        %v387 = vld [vmem:[#allocation2 + $0x70] sm:$0xff]
        %v388 = vld [vmem:[#allocation2 + $0x78] sm:$0xff]
        %v389 = vld [vmem:[#allocation2 + $0x80] sm:$0xff]
        %v390 = vld [vmem:[#allocation2 + $0x88] sm:$0xff]
        %v391 = vld [vmem:[#allocation2 + $0x90] sm:$0xff]
        %v392 = vld [vmem:[#allocation2 + $0x98] sm:$0xff]
        %v393 = vld [vmem:[#allocation2 + $0xa0] sm:$0xff]
        %v394 = vld [vmem:[#allocation2 + $0xa8] sm:$0xff]
        %v395 = vld [vmem:[#allocation2 + $0xb0] sm:$0xff]
        %v396 = vld [vmem:[#allocation2 + $0xb8] sm:$0xff]
        %v397 = vld [vmem:[#allocation2 + $0xc0] sm:$0xff]
        %v398 = vld [vmem:[#allocation2 + $0xc8] sm:$0xff]
        %v399 = vld [vmem:[#allocation2 + $0xd0] sm:$0xff]
        %v400 = vld [vmem:[#allocation2 + $0xd8] sm:$0xff]
        %v401 = vld [vmem:[#allocation2 + $0xe0] sm:$0xff]
        %v402 = vld [vmem:[#allocation2 + $0xe8] sm:$0xff]
        %v403 = vld [vmem:[#allocation2 + $0xf0] sm:$0xff]
        %v404 = vld [vmem:[#allocation2 + $0xf8] sm:$0xff]
        %v405 = vld [vmem:[#allocation2 + $0x100] sm:$0xff]
        %v406 = vld [vmem:[#allocation2 + $0x108] sm:$0xff]
        %v407 = vld [vmem:[#allocation2 + $0x110] sm:$0xff]
        %v408 = vld [vmem:[#allocation2 + $0x118] sm:$0xff]
        %v409 = vld [vmem:[#allocation2 + $0x120] sm:$0xff]
        %v410 = vld [vmem:[#allocation2 + $0x128] sm:$0xff]
        %v411 = vld [vmem:[#allocation2 + $0x130] sm:$0xff]
        %v412 = vld [vmem:[#allocation2 + $0x138] sm:$0xff]
        %v413 = vld [vmem:[#allocation2 + $0x140] sm:$0xff]
        %v414 = vld [vmem:[#allocation2 + $0x148] sm:$0xff]
        %v415 = vld [vmem:[#allocation2 + $0x150] sm:$0xff]
        %v416 = vld [vmem:[#allocation2 + $0x158] sm:$0xff]
        %v417 = vld [vmem:[#allocation2 + $0x160] sm:$0xff]
        %v418 = vld [vmem:[#allocation2 + $0x168] sm:$0xff]
        %v419 = vld [vmem:[#allocation2 + $0x170] sm:$0xff]
        %v420 = vld [vmem:[#allocation2 + $0x178] sm:$0xff]
        %v421 = vld [vmem:[#allocation2 + $0x180] sm:$0xff]
        %v422 = vld [vmem:[#allocation2 + $0x188] sm:$0xff]
        %v423 = vld [vmem:[#allocation2 + $0x190] sm:$0xff]
        %v424 = vld [vmem:[#allocation2 + $0x198] sm:$0xff]
        %v425 = vld [vmem:[#allocation2 + $0x1a0] sm:$0xff]
        %v426 = vld [vmem:[#allocation2 + $0x1a8] sm:$0xff]
        %v427 = vld [vmem:[#allocation2 + $0x1b0] sm:$0xff]
        %v428 = vld [vmem:[#allocation2 + $0x1b8] sm:$0xff]
        %v429 = vld [vmem:[#allocation2 + $0x1c0] sm:$0xff]
        %v430 = vld [vmem:[#allocation2 + $0x1c8] sm:$0xff]
        %v431 = vld [vmem:[#allocation2 + $0x1d0] sm:$0xff]
        %v432 = vld [vmem:[#allocation2 + $0x1d8] sm:$0xff]
        %v433 = vld [vmem:[#allocation2 + $0x1e0] sm:$0xff]
        %v434 = vld [vmem:[#allocation2 + $0x1e8] sm:$0xff]
        %v435 = vld [vmem:[#allocation2 + $0x1f0] sm:$0xff]
        %v436 = vld [vmem:[#allocation2 + $0x1f8] sm:$0xff]
        %v437 = vld [vmem:[%s282] sm:$0xff]
        %v438 = vld [vmem:[%s282 + $0x8] sm:$0xff]
        %v439 = vld [vmem:[%s282 + $0x10] sm:$0xff]
        %v440 = vld [vmem:[%s282 + $0x18] sm:$0xff]
        %v441 = vld [vmem:[%s282 + $0x20] sm:$0xff]
        %v442 = vld [vmem:[%s282 + $0x28] sm:$0xff]
        %v443 = vld [vmem:[%s282 + $0x30] sm:$0xff]
        %v444 = vld [vmem:[%s282 + $0x38] sm:$0xff]
        %v445 = vld [vmem:[%s282 + $0x40] sm:$0xff]
        %v446 = vld [vmem:[%s282 + $0x48] sm:$0xff]
        %v447 = vld [vmem:[%s282 + $0x50] sm:$0xff]
        %v448 = vld [vmem:[%s282 + $0x58] sm:$0xff]
        %v449 = vld [vmem:[%s282 + $0x60] sm:$0xff]
        %v450 = vld [vmem:[%s282 + $0x68] sm:$0xff]
        %v451 = vld [vmem:[%s282 + $0x70] sm:$0xff]
        %v452 = vld [vmem:[%s282 + $0x78] sm:$0xff]
        %v453 = vld [vmem:[%s282 + $0x80] sm:$0xff]
        %v454 = vld [vmem:[%s282 + $0x88] sm:$0xff]
        %v455 = vld [vmem:[%s282 + $0x90] sm:$0xff]
        %v456 = vld [vmem:[%s282 + $0x98] sm:$0xff]
        %v457 = vld [vmem:[%s282 + $0xa0] sm:$0xff]
        %v458 = vld [vmem:[%s282 + $0xa8] sm:$0xff]
        %v459 = vld [vmem:[%s282 + $0xb0] sm:$0xff]
        %v460 = vld [vmem:[%s282 + $0xb8] sm:$0xff]
        %v461 = vld [vmem:[%s282 + $0xc0] sm:$0xff]
        %v462 = vld [vmem:[%s282 + $0xc8] sm:$0xff]
        %v463 = vld [vmem:[%s282 + $0xd0] sm:$0xff]
        %v464 = vld [vmem:[%s282 + $0xd8] sm:$0xff]
        %v465 = vld [vmem:[%s282 + $0xe0] sm:$0xff]
        %v466 = vld [vmem:[%s282 + $0xe8] sm:$0xff]
        %v467 = vld [vmem:[%s282 + $0xf0] sm:$0xff]
        %v468 = vld [vmem:[%s282 + $0xf8] sm:$0xff]
        %v469 = vld [vmem:[%s282 + $0x100] sm:$0xff]
        %v470 = vld [vmem:[%s282 + $0x108] sm:$0xff]
        %v471 = vld [vmem:[%s282 + $0x110] sm:$0xff]
        %v472 = vld [vmem:[%s282 + $0x118] sm:$0xff]
        %v473 = vld [vmem:[%s282 + $0x120] sm:$0xff]
        %v474 = vld [vmem:[%s282 + $0x128] sm:$0xff]
        %v475 = vld [vmem:[%s282 + $0x130] sm:$0xff]
        %v476 = vld [vmem:[%s282 + $0x138] sm:$0xff]
        %v477 = vld [vmem:[%s282 + $0x140] sm:$0xff]
        %v478 = vld [vmem:[%s282 + $0x148] sm:$0xff]
        %v479 = vld [vmem:[%s282 + $0x150] sm:$0xff]
        %v480 = vld [vmem:[%s282 + $0x158] sm:$0xff]
        %v481 = vld [vmem:[%s282 + $0x160] sm:$0xff]
        %v482 = vld [vmem:[%s282 + $0x168] sm:$0xff]
        %v483 = vld [vmem:[%s282 + $0x170] sm:$0xff]
        %v484 = vld [vmem:[%s282 + $0x178] sm:$0xff]
        %v485 = vld [vmem:[%s282 + $0x180] sm:$0xff]
        %v486 = vld [vmem:[%s282 + $0x188] sm:$0xff]
        %v487 = vld [vmem:[%s282 + $0x190] sm:$0xff]
        %v488 = vld [vmem:[%s282 + $0x198] sm:$0xff]
        %v489 = vld [vmem:[%s282 + $0x1a0] sm:$0xff]
        %v490 = vld [vmem:[%s282 + $0x1a8] sm:$0xff]
        %v491 = vld [vmem:[%s282 + $0x1b0] sm:$0xff]
        %v492 = vld [vmem:[%s282 + $0x1b8] sm:$0xff]
        %v493 = vld [vmem:[%s282 + $0x1c0] sm:$0xff]
        %v494 = vld [vmem:[%s282 + $0x1c8] sm:$0xff]
        %v495 = vld [vmem:[%s282 + $0x1d0] sm:$0xff]
        %v496 = vld [vmem:[%s282 + $0x1d8] sm:$0xff]
        %v497 = vld [vmem:[%s282 + $0x1e0] sm:$0xff]
        %v498 = vld [vmem:[%s282 + $0x1e8] sm:$0xff]
        %v499 = vld [vmem:[%s282 + $0x1f0] sm:$0xff]
        %v500 = vld [vmem:[%s282 + $0x1f8] sm:$0xff]
        %v501 = vld [vmem:[%s292] sm:$0xf]
        %v502 = vld [vmem:[%s292 + $0x4] sm:$0xf]
        %v503 = vld [vmem:[%s292 + $0x8] sm:$0xf]
        %v504 = vld [vmem:[%s292 + $0xc] sm:$0xf]
        %v505 = vld [vmem:[%s292 + $0x10] sm:$0xf]
        %v506 = vld [vmem:[%s292 + $0x14] sm:$0xf]
        %v507 = vld [vmem:[%s292 + $0x18] sm:$0xf]
        %v508 = vld [vmem:[%s292 + $0x1c] sm:$0xf]
        %v509 = vld [vmem:[%s292 + $0x20] sm:$0xf]
        %v510 = vld [vmem:[%s292 + $0x24] sm:$0xf]
        %v511 = vld [vmem:[%s292 + $0x28] sm:$0xf]
        %v512 = vld [vmem:[%s292 + $0x2c] sm:$0xf]
        %v513 = vld [vmem:[%s292 + $0x30] sm:$0xf]
        %v514 = vld [vmem:[%s292 + $0x34] sm:$0xf]
        %v515 = vld [vmem:[%s292 + $0x38] sm:$0xf]
        %v516 = vld [vmem:[%s292 + $0x3c] sm:$0xf]
        %v517 = vld [vmem:[%s292 + $0x40] sm:$0xf]
        %v518 = vld [vmem:[%s292 + $0x44] sm:$0xf]
        %v519 = vld [vmem:[%s292 + $0x48] sm:$0xf]
        %v520 = vld [vmem:[%s292 + $0x4c] sm:$0xf]
        %v585 = vunpack.c.l.b16 %v437
        %v586 = vunpack.c.h.b16 %v437
        %v587 = vunpack.c.l.b16 %v438
        %v588 = vunpack.c.h.b16 %v438
        %v589 = vunpack.c.l.b16 %v439
        %v590 = vunpack.c.h.b16 %v439
        %v591 = vunpack.c.l.b16 %v440
        %v592 = vunpack.c.h.b16 %v440
        %v593 = vunpack.c.l.b16 %v441
        %v594 = vunpack.c.h.b16 %v441
        %v595 = vunpack.c.l.b16 %v442
        %v596 = vunpack.c.h.b16 %v442
        %v597 = vunpack.c.l.b16 %v443
        %v598 = vunpack.c.h.b16 %v443
        %v599 = vunpack.c.l.b16 %v444
        %v600 = vunpack.c.h.b16 %v444
        %v601 = vunpack.c.l.b16 %v445
        %v602 = vunpack.c.h.b16 %v445
        %v603 = vunpack.c.l.b16 %v446
        %v604 = vunpack.c.h.b16 %v446
        %v605 = vunpack.c.l.b16 %v447
        %v606 = vunpack.c.h.b16 %v447
        %v607 = vunpack.c.l.b16 %v448
        %v608 = vunpack.c.h.b16 %v448
        %v609 = vunpack.c.l.b16 %v449
        %v610 = vunpack.c.h.b16 %v449
        %v611 = vunpack.c.l.b16 %v450
        %v612 = vunpack.c.h.b16 %v450
        %v613 = vunpack.c.l.b16 %v451
        %v614 = vunpack.c.h.b16 %v451
        %v615 = vunpack.c.l.b16 %v452
        %v616 = vunpack.c.h.b16 %v452
        %v617 = vunpack.c.l.b16 %v453
        %v618 = vunpack.c.h.b16 %v453
        %v619 = vunpack.c.l.b16 %v454
        %v620 = vunpack.c.h.b16 %v454
        %v621 = vunpack.c.l.b16 %v455
        %v622 = vunpack.c.h.b16 %v455
        %v623 = vunpack.c.l.b16 %v456
        %v624 = vunpack.c.h.b16 %v456
        %v625 = vunpack.c.l.b16 %v457
        %v626 = vunpack.c.h.b16 %v457
        %v627 = vunpack.c.l.b16 %v458
        %v628 = vunpack.c.h.b16 %v458
        %v629 = vunpack.c.l.b16 %v459
        %v630 = vunpack.c.h.b16 %v459
        %v631 = vunpack.c.l.b16 %v460
        %v632 = vunpack.c.h.b16 %v460
        %v633 = vunpack.c.l.b16 %v461
        %v634 = vunpack.c.h.b16 %v461
        %v635 = vunpack.c.l.b16 %v462
        %v636 = vunpack.c.h.b16 %v462
        %v637 = vunpack.c.l.b16 %v463
        %v638 = vunpack.c.h.b16 %v463
        %v639 = vunpack.c.l.b16 %v464
        %v640 = vunpack.c.h.b16 %v464
        %v641 = vunpack.c.l.b16 %v465
        %v642 = vunpack.c.h.b16 %v465
        %v643 = vunpack.c.l.b16 %v466
        %v644 = vunpack.c.h.b16 %v466
        %v645 = vunpack.c.l.b16 %v467
        %v646 = vunpack.c.h.b16 %v467
        %v647 = vunpack.c.l.b16 %v468
        %v648 = vunpack.c.h.b16 %v468
        %v649 = vunpack.c.l.b16 %v469
        %v650 = vunpack.c.h.b16 %v469
        %v651 = vunpack.c.l.b16 %v470
        %v652 = vunpack.c.h.b16 %v470
        %v653 = vunpack.c.l.b16 %v471
        %v654 = vunpack.c.h.b16 %v471
        %v655 = vunpack.c.l.b16 %v472
        %v656 = vunpack.c.h.b16 %v472
        %v657 = vunpack.c.l.b16 %v473
        %v658 = vunpack.c.h.b16 %v473
        %v659 = vunpack.c.l.b16 %v474
        %v660 = vunpack.c.h.b16 %v474
        %v661 = vunpack.c.l.b16 %v475
        %v662 = vunpack.c.h.b16 %v475
        %v663 = vunpack.c.l.b16 %v476
        %v664 = vunpack.c.h.b16 %v476
        %v665 = vunpack.c.l.b16 %v477
        %v666 = vunpack.c.h.b16 %v477
        %v667 = vunpack.c.l.b16 %v478
        %v668 = vunpack.c.h.b16 %v478
        %v669 = vunpack.c.l.b16 %v479
        %v670 = vunpack.c.h.b16 %v479
        %v671 = vunpack.c.l.b16 %v480
        %v672 = vunpack.c.h.b16 %v480
        %v673 = vunpack.c.l.b16 %v481
        %v674 = vunpack.c.h.b16 %v481
        %v675 = vunpack.c.l.b16 %v482
        %v676 = vunpack.c.h.b16 %v482
        %v677 = vunpack.c.l.b16 %v483
        %v678 = vunpack.c.h.b16 %v483
        %v679 = vunpack.c.l.b16 %v484
        %v680 = vunpack.c.h.b16 %v484
        %v681 = vunpack.c.l.b16 %v485
        %v682 = vunpack.c.h.b16 %v485
        %v683 = vunpack.c.l.b16 %v486
        %v684 = vunpack.c.h.b16 %v486
        %v685 = vunpack.c.l.b16 %v487
        %v686 = vunpack.c.h.b16 %v487
        %v687 = vunpack.c.l.b16 %v488
        %v688 = vunpack.c.h.b16 %v488
        %v689 = vunpack.c.l.b16 %v489
        %v690 = vunpack.c.h.b16 %v489
        %v691 = vunpack.c.l.b16 %v490
        %v692 = vunpack.c.h.b16 %v490
        %v693 = vunpack.c.l.b16 %v491
        %v694 = vunpack.c.h.b16 %v491
        %v695 = vunpack.c.l.b16 %v492
        %v696 = vunpack.c.h.b16 %v492
        %v697 = vunpack.c.l.b16 %v493
        %v698 = vunpack.c.h.b16 %v493
        %v699 = vunpack.c.l.b16 %v494
        %v700 = vunpack.c.h.b16 %v494
        %v701 = vunpack.c.l.b16 %v495
        %v702 = vunpack.c.h.b16 %v495
        %v703 = vunpack.c.l.b16 %v496
        %v704 = vunpack.c.h.b16 %v496
        %v705 = vunpack.c.l.b16 %v497
        %v706 = vunpack.c.h.b16 %v497
        %v707 = vunpack.c.l.b16 %v498
        %v708 = vunpack.c.h.b16 %v498
        %v709 = vunpack.c.l.b16 %v499
        %v710 = vunpack.c.h.b16 %v499
        %v711 = vunpack.c.l.b16 %v500
        %v712 = vunpack.c.h.b16 %v500
        %v713 = vpack.c.b16 %v587, %v585
        %v714 = vpack.c.b16 %v588, %v586
        %v715 = vpack.c.b16 %v591, %v589
        %v716 = vpack.c.b16 %v592, %v590
        %v717 = vpack.c.b16 %v595, %v593
        %v718 = vpack.c.b16 %v596, %v594
        %v719 = vpack.c.b16 %v599, %v597
        %v720 = vpack.c.b16 %v600, %v598
        %v721 = vpack.c.b16 %v603, %v601
        %v722 = vpack.c.b16 %v604, %v602
        %v723 = vpack.c.b16 %v607, %v605
        %v724 = vpack.c.b16 %v608, %v606
        %v725 = vpack.c.b16 %v611, %v609
        %v726 = vpack.c.b16 %v612, %v610
        %v727 = vpack.c.b16 %v615, %v613
        %v728 = vpack.c.b16 %v616, %v614
        %v729 = vpack.c.b16 %v619, %v617
        %v730 = vpack.c.b16 %v620, %v618
        %v731 = vpack.c.b16 %v623, %v621
        %v732 = vpack.c.b16 %v624, %v622
        %v733 = vpack.c.b16 %v627, %v625
        %v734 = vpack.c.b16 %v628, %v626
        %v735 = vpack.c.b16 %v631, %v629
        %v736 = vpack.c.b16 %v632, %v630
        %v737 = vpack.c.b16 %v635, %v633
        %v738 = vpack.c.b16 %v636, %v634
        %v739 = vpack.c.b16 %v639, %v637
        %v740 = vpack.c.b16 %v640, %v638
        %v741 = vpack.c.b16 %v643, %v641
        %v742 = vpack.c.b16 %v644, %v642
        %v743 = vpack.c.b16 %v647, %v645
        %v744 = vpack.c.b16 %v648, %v646
        %v745 = vpack.c.b16 %v651, %v649
        %v746 = vpack.c.b16 %v652, %v650
        %v747 = vpack.c.b16 %v655, %v653
        %v748 = vpack.c.b16 %v656, %v654
        %v749 = vpack.c.b16 %v659, %v657
        %v750 = vpack.c.b16 %v660, %v658
        %v751 = vpack.c.b16 %v663, %v661
        %v752 = vpack.c.b16 %v664, %v662
        %v753 = vpack.c.b16 %v667, %v665
        %v754 = vpack.c.b16 %v668, %v666
        %v755 = vpack.c.b16 %v671, %v669
        %v756 = vpack.c.b16 %v672, %v670
        %v757 = vpack.c.b16 %v675, %v673
        %v758 = vpack.c.b16 %v676, %v674
        %v759 = vpack.c.b16 %v679, %v677
        %v760 = vpack.c.b16 %v680, %v678
        %v761 = vpack.c.b16 %v683, %v681
        %v762 = vpack.c.b16 %v684, %v682
        %v763 = vpack.c.b16 %v687, %v685
        %v764 = vpack.c.b16 %v688, %v686
        %v765 = vpack.c.b16 %v691, %v689
        %v766 = vpack.c.b16 %v692, %v690
        %v767 = vpack.c.b16 %v695, %v693
        %v768 = vpack.c.b16 %v696, %v694
        %v769 = vpack.c.b16 %v699, %v697
        %v770 = vpack.c.b16 %v700, %v698
        %v771 = vpack.c.b16 %v703, %v701
        %v772 = vpack.c.b16 %v704, %v702
        %v773 = vpack.c.b16 %v707, %v705
        %v774 = vpack.c.b16 %v708, %v706
        %v775 = vpack.c.b16 %v711, %v709
        %v776 = vpack.c.b16 %v712, %v710
        %v829 = vunpack.c.l.b16 %v501
        %v830 = vunpack.c.l.b16 %v502
        %v831 = vunpack.c.l.b16 %v503
        %v832 = vunpack.c.l.b16 %v504
        %v833 = vunpack.c.l.b16 %v505
        %v834 = vunpack.c.l.b16 %v506
        %v835 = vunpack.c.l.b16 %v507
        %v836 = vunpack.c.l.b16 %v508
        %v837 = vunpack.c.l.b16 %v509
        %v838 = vunpack.c.l.b16 %v510
        %v839 = vunpack.c.l.b16 %v511
        %v840 = vunpack.c.l.b16 %v512
        %v841 = vunpack.c.l.b16 %v513
        %v842 = vunpack.c.l.b16 %v514
        %v843 = vunpack.c.l.b16 %v515
        %v844 = vunpack.c.l.b16 %v516
        %v845 = vunpack.c.l.b16 %v517
        %v846 = vunpack.c.l.b16 %v518
        %v847 = vunpack.c.l.b16 %v519
        %v848 = vunpack.c.l.b16 %v520
        %v849 = vpack.c.b16 %v830, %v829
        %v850 = vpack.c.b16 %v832, %v831
        %v851 = vpack.c.b16 %v834, %v833
        %v852 = vpack.c.b16 %v836, %v835
        %v853 = vpack.c.b16 %v838, %v837
        %v854 = vpack.c.b16 %v840, %v839
        %v855 = vpack.c.b16 %v842, %v841
        %v856 = vpack.c.b16 %v844, %v843
        %v857 = vpack.c.b16 %v846, %v845
        %v858 = vpack.c.b16 %v848, %v847
        %vm869 = vcmask 261120
        %v871 = vsel %vm869, %v714, 0
        %v874 = vsel %vm869, %v716, 0
        %v877 = vsel %vm869, %v718, 0
        %v880 = vsel %vm869, %v720, 0
        %v883 = vsel %vm869, %v722, 0
        %v886 = vsel %vm869, %v724, 0
        %v889 = vsel %vm869, %v726, 0
        %v892 = vsel %vm869, %v728, 0
        %v895 = vsel %vm869, %v730, 0
        %v898 = vsel %vm869, %v732, 0
        %v901 = vsel %vm869, %v734, 0
        %v904 = vsel %vm869, %v736, 0
        %v907 = vsel %vm869, %v738, 0
        %v910 = vsel %vm869, %v740, 0
        %v913 = vsel %vm869, %v742, 0
        %v916 = vsel %vm869, %v744, 0
        %v919 = vsel %vm869, %v746, 0
        %v922 = vsel %vm869, %v748, 0
        %v925 = vsel %vm869, %v750, 0
        %v928 = vsel %vm869, %v752, 0
        %v931 = vsel %vm869, %v754, 0
        %v934 = vsel %vm869, %v756, 0
        %v937 = vsel %vm869, %v758, 0
        %v940 = vsel %vm869, %v760, 0
        %v943 = vsel %vm869, %v762, 0
        %v946 = vsel %vm869, %v764, 0
        %v949 = vsel %vm869, %v766, 0
        %v952 = vsel %vm869, %v768, 0
        %v955 = vsel %vm869, %v770, 0
        %v958 = vsel %vm869, %v772, 0
        %v961 = vsel %vm869, %v774, 0
        %v964 = vsel %vm869, %v776, 0
        %966 = vmatprep.subr.bf16.mxu0 0
        %967 = vmatpush1.bf16.msra.mxu0 %v849
        %968 = vmatprep.subr.bf16.mxu0 0
        %969 = vmatpush1.bf16.msra.mxu0 %v850
        %970 = vmatprep.subr.bf16.mxu0 0
        %971 = vmatpush1.bf16.msra.mxu0 %v851
        %972 = vmatprep.subr.bf16.mxu0 0
        %973 = vmatpush1.bf16.msra.mxu0 %v852
        %974 = vmatprep.subr.bf16.mxu0 0
        %975 = vmatpush1.bf16.msra.mxu0 %v853
        %976 = vmatprep.subr.bf16.mxu0 0
        %977 = vmatpush1.bf16.msra.mxu0 %v854
        %978 = vmatprep.subr.bf16.mxu0 0
        %979 = vmatpush1.bf16.msra.mxu0 %v855
        %980 = vmatprep.subr.bf16.mxu0 0
        %981 = vmatpush1.bf16.msra.mxu0 %v856
        %982 = vmatprep.subr.bf16.mxu0 0
        %983 = vmatpush1.bf16.msra.mxu0 %v857
        %984 = vmatprep.subr.bf16.mxu0 0
        %985 = vmatpush1.bf16.msra.mxu0 %v858
        %986 = vmatprep.subr.bf16.mxu0 0
        %987 = vmatpush1.bf16.msra.mxu0 0
        %988 = vmatprep.subr.bf16.mxu0 0
        %989 = vmatpush1.bf16.msra.mxu0 0
        %990 = vmatprep.subr.bf16.mxu0 0
        %991 = vmatpush1.bf16.msra.mxu0 0
        %992 = vmatprep.subr.bf16.mxu0 0
        %993 = vmatpush1.bf16.msra.mxu0 0
        %994 = vmatprep.subr.bf16.mxu0 0
        %995 = vmatpush1.bf16.msra.mxu0 0
        %996 = vmatprep.subr.bf16.mxu0 0
        %997 = vmatpush1.bf16.msra.mxu0 0
        %998 = vmatprep.mubr.bf16.mxu0 %v871
        %999 = vmatmul.mubr.bf16.gmra.mrb[0].mxu0 %v713
        %v1000 = vpop.f32.mrb[0].mxu0
        %v1001 = vadd.f32 0.0, %v1000
        %v1002 = vpop.f32.mrb[0].mxu0
        %v1003 = vpop.f32.mrb[0].mxu0
        %v1004 = vadd.f32 0.0, %v1003
        %v1005 = vpop.f32.mrb[0].mxu0
        %1006 = vmatprep.mubr.bf16.mxu0 %v874
        %1007 = vmatmul.mubr.bf16.gmra.mrb[0].mxu0 %v715
        %v1008 = vpop.f32.mrb[0].mxu0
        %v1009 = vadd.f32 0.0, %v1008
        %v1010 = vpop.f32.mrb[0].mxu0
        %v1011 = vpop.f32.mrb[0].mxu0
        %v1012 = vadd.f32 0.0, %v1011
        %v1013 = vpop.f32.mrb[0].mxu0
        %1014 = vmatprep.mubr.bf16.mxu0 %v877
        %1015 = vmatmul.mubr.bf16.gmra.mrb[0].mxu0 %v717
        %v1016 = vpop.f32.mrb[0].mxu0
        %v1017 = vadd.f32 0.0, %v1016
        %v1018 = vpop.f32.mrb[0].mxu0
        %v1019 = vpop.f32.mrb[0].mxu0
        %v1020 = vadd.f32 0.0, %v1019
        %v1021 = vpop.f32.mrb[0].mxu0
        %1022 = vmatprep.mubr.bf16.mxu0 %v880
        %1023 = vmatmul.mubr.bf16.gmra.mrb[0].mxu0 %v719
        %v1024 = vpop.f32.mrb[0].mxu0
        %v1025 = vadd.f32 0.0, %v1024
        %v1026 = vpop.f32.mrb[0].mxu0
        %v1027 = vpop.f32.mrb[0].mxu0
        %v1028 = vadd.f32 0.0, %v1027
        %v1029 = vpop.f32.mrb[0].mxu0
        %1030 = vmatprep.mubr.bf16.mxu0 %v883
        %1031 = vmatmul.mubr.bf16.gmra.mrb[0].mxu0 %v721
        %v1032 = vpop.f32.mrb[0].mxu0
        %v1033 = vadd.f32 0.0, %v1032
        %v1034 = vpop.f32.mrb[0].mxu0
        %v1035 = vpop.f32.mrb[0].mxu0
        %v1036 = vadd.f32 0.0, %v1035
        %v1037 = vpop.f32.mrb[0].mxu0
        %1038 = vmatprep.mubr.bf16.mxu0 %v886
        %1039 = vmatmul.mubr.bf16.gmra.mrb[0].mxu0 %v723
        %v1040 = vpop.f32.mrb[0].mxu0
        %v1041 = vadd.f32 0.0, %v1040
        %v1042 = vpop.f32.mrb[0].mxu0
        %v1043 = vpop.f32.mrb[0].mxu0
        %v1044 = vadd.f32 0.0, %v1043
        %v1045 = vpop.f32.mrb[0].mxu0
        %1046 = vmatprep.mubr.bf16.mxu0 %v889
        %1047 = vmatmul.mubr.bf16.gmra.mrb[0].mxu0 %v725
        %v1048 = vpop.f32.mrb[0].mxu0
        %v1049 = vadd.f32 0.0, %v1048
        %v1050 = vpop.f32.mrb[0].mxu0
        %v1051 = vpop.f32.mrb[0].mxu0
        %v1052 = vadd.f32 0.0, %v1051
        %v1053 = vpop.f32.mrb[0].mxu0
        %1054 = vmatprep.mubr.bf16.mxu0 %v892
        %1055 = vmatmul.mubr.bf16.gmra.mrb[0].mxu0 %v727
        %v1056 = vpop.f32.mrb[0].mxu0
        %v1057 = vadd.f32 0.0, %v1056
        %v1058 = vpop.f32.mrb[0].mxu0
        %v1059 = vpop.f32.mrb[0].mxu0
        %v1060 = vadd.f32 0.0, %v1059
        %v1061 = vpop.f32.mrb[0].mxu0
        %1062 = vmatprep.mubr.bf16.mxu0 %v895
        %1063 = vmatmul.mubr.bf16.gmra.mrb[0].mxu0 %v729
        %v1064 = vpop.f32.mrb[0].mxu0
        %v1065 = vadd.f32 0.0, %v1064
        %v1066 = vpop.f32.mrb[0].mxu0
        %v1067 = vpop.f32.mrb[0].mxu0
        %v1068 = vadd.f32 0.0, %v1067
        %v1069 = vpop.f32.mrb[0].mxu0
        %1070 = vmatprep.mubr.bf16.mxu0 %v898
        %1071 = vmatmul.mubr.bf16.gmra.mrb[0].mxu0 %v731
        %v1072 = vpop.f32.mrb[0].mxu0
        %v1073 = vadd.f32 0.0, %v1072
        %v1074 = vpop.f32.mrb[0].mxu0
        %v1075 = vpop.f32.mrb[0].mxu0
        %v1076 = vadd.f32 0.0, %v1075
        %v1077 = vpop.f32.mrb[0].mxu0
        %1078 = vmatprep.mubr.bf16.mxu0 %v901
        %1079 = vmatmul.mubr.bf16.gmra.mrb[0].mxu0 %v733
        %v1080 = vpop.f32.mrb[0].mxu0
        %v1081 = vadd.f32 0.0, %v1080
        %v1082 = vpop.f32.mrb[0].mxu0
        %v1083 = vpop.f32.mrb[0].mxu0
        %v1084 = vadd.f32 0.0, %v1083
        %v1085 = vpop.f32.mrb[0].mxu0
        %1086 = vmatprep.mubr.bf16.mxu0 %v904
        %1087 = vmatmul.mubr.bf16.gmra.mrb[0].mxu0 %v735
        %v1088 = vpop.f32.mrb[0].mxu0
        %v1089 = vadd.f32 0.0, %v1088
        %v1090 = vpop.f32.mrb[0].mxu0
        %v1091 = vpop.f32.mrb[0].mxu0
        %v1092 = vadd.f32 0.0, %v1091
        %v1093 = vpop.f32.mrb[0].mxu0
        %1094 = vmatprep.mubr.bf16.mxu0 %v907
        %1095 = vmatmul.mubr.bf16.gmra.mrb[0].mxu0 %v737
        %v1096 = vpop.f32.mrb[0].mxu0
        %v1097 = vadd.f32 0.0, %v1096
        %v1098 = vpop.f32.mrb[0].mxu0
        %v1099 = vpop.f32.mrb[0].mxu0
        %v1100 = vadd.f32 0.0, %v1099
        %v1101 = vpop.f32.mrb[0].mxu0
        %1102 = vmatprep.mubr.bf16.mxu0 %v910
        %1103 = vmatmul.mubr.bf16.gmra.mrb[0].mxu0 %v739
        %v1104 = vpop.f32.mrb[0].mxu0
        %v1105 = vadd.f32 0.0, %v1104
        %v1106 = vpop.f32.mrb[0].mxu0
        %v1107 = vpop.f32.mrb[0].mxu0
        %v1108 = vadd.f32 0.0, %v1107
        %v1109 = vpop.f32.mrb[0].mxu0
        %1110 = vmatprep.mubr.bf16.mxu0 %v913
        %1111 = vmatmul.mubr.bf16.gmra.mrb[0].mxu0 %v741
        %v1112 = vpop.f32.mrb[0].mxu0
        %v1113 = vadd.f32 0.0, %v1112
        %v1114 = vpop.f32.mrb[0].mxu0
        %v1115 = vpop.f32.mrb[0].mxu0
        %v1116 = vadd.f32 0.0, %v1115
        %v1117 = vpop.f32.mrb[0].mxu0
        %1118 = vmatprep.mubr.bf16.mxu0 %v916
        %1119 = vmatmul.mubr.bf16.gmra.mrb[0].mxu0 %v743
        %v1120 = vpop.f32.mrb[0].mxu0
        %v1121 = vadd.f32 0.0, %v1120
        %v1122 = vpop.f32.mrb[0].mxu0
        %v1123 = vpop.f32.mrb[0].mxu0
        %v1124 = vadd.f32 0.0, %v1123
        %v1125 = vpop.f32.mrb[0].mxu0
        %1126 = vmatprep.mubr.bf16.mxu0 %v919
        %1127 = vmatmul.mubr.bf16.gmra.mrb[0].mxu0 %v745
        %v1128 = vpop.f32.mrb[0].mxu0
        %v1129 = vadd.f32 0.0, %v1128
        %v1130 = vpop.f32.mrb[0].mxu0
        %v1131 = vpop.f32.mrb[0].mxu0
        %v1132 = vadd.f32 0.0, %v1131
        %v1133 = vpop.f32.mrb[0].mxu0
        %1134 = vmatprep.mubr.bf16.mxu0 %v922
        %1135 = vmatmul.mubr.bf16.gmra.mrb[0].mxu0 %v747
        %v1136 = vpop.f32.mrb[0].mxu0
        %v1137 = vadd.f32 0.0, %v1136
        %v1138 = vpop.f32.mrb[0].mxu0
        %v1139 = vpop.f32.mrb[0].mxu0
        %v1140 = vadd.f32 0.0, %v1139
        %v1141 = vpop.f32.mrb[0].mxu0
        %1142 = vmatprep.mubr.bf16.mxu0 %v925
        %1143 = vmatmul.mubr.bf16.gmra.mrb[0].mxu0 %v749
        %v1144 = vpop.f32.mrb[0].mxu0
        %v1145 = vadd.f32 0.0, %v1144
        %v1146 = vpop.f32.mrb[0].mxu0
        %v1147 = vpop.f32.mrb[0].mxu0
        %v1148 = vadd.f32 0.0, %v1147
        %v1149 = vpop.f32.mrb[0].mxu0
        %1150 = vmatprep.mubr.bf16.mxu0 %v928
        %1151 = vmatmul.mubr.bf16.gmra.mrb[0].mxu0 %v751
        %v1152 = vpop.f32.mrb[0].mxu0
        %v1153 = vadd.f32 0.0, %v1152
        %v1154 = vpop.f32.mrb[0].mxu0
        %v1155 = vpop.f32.mrb[0].mxu0
        %v1156 = vadd.f32 0.0, %v1155
        %v1157 = vpop.f32.mrb[0].mxu0
        %1158 = vmatprep.mubr.bf16.mxu0 %v931
        %1159 = vmatmul.mubr.bf16.gmra.mrb[0].mxu0 %v753
        %v1160 = vpop.f32.mrb[0].mxu0
        %v1161 = vadd.f32 0.0, %v1160
        %v1162 = vpop.f32.mrb[0].mxu0
        %v1163 = vpop.f32.mrb[0].mxu0
        %v1164 = vadd.f32 0.0, %v1163
        %v1165 = vpop.f32.mrb[0].mxu0
        %1166 = vmatprep.mubr.bf16.mxu0 %v934
        %1167 = vmatmul.mubr.bf16.gmra.mrb[0].mxu0 %v755
        %v1168 = vpop.f32.mrb[0].mxu0
        %v1169 = vadd.f32 0.0, %v1168
        %v1170 = vpop.f32.mrb[0].mxu0
        %v1171 = vpop.f32.mrb[0].mxu0
        %v1172 = vadd.f32 0.0, %v1171
        %v1173 = vpop.f32.mrb[0].mxu0
        %1174 = vmatprep.mubr.bf16.mxu0 %v937
        %1175 = vmatmul.mubr.bf16.gmra.mrb[0].mxu0 %v757
        %v1176 = vpop.f32.mrb[0].mxu0
        %v1177 = vadd.f32 0.0, %v1176
        %v1178 = vpop.f32.mrb[0].mxu0
        %v1179 = vpop.f32.mrb[0].mxu0
        %v1180 = vadd.f32 0.0, %v1179
        %v1181 = vpop.f32.mrb[0].mxu0
        %1182 = vmatprep.mubr.bf16.mxu0 %v940
        %1183 = vmatmul.mubr.bf16.gmra.mrb[0].mxu0 %v759
        %v1184 = vpop.f32.mrb[0].mxu0
        %v1185 = vadd.f32 0.0, %v1184
        %v1186 = vpop.f32.mrb[0].mxu0
        %v1187 = vpop.f32.mrb[0].mxu0
        %v1188 = vadd.f32 0.0, %v1187
        %v1189 = vpop.f32.mrb[0].mxu0
        %1190 = vmatprep.mubr.bf16.mxu0 %v943
        %1191 = vmatmul.mubr.bf16.gmra.mrb[0].mxu0 %v761
        %v1192 = vpop.f32.mrb[0].mxu0
        %v1193 = vadd.f32 0.0, %v1192
        %v1194 = vpop.f32.mrb[0].mxu0
        %v1195 = vpop.f32.mrb[0].mxu0
        %v1196 = vadd.f32 0.0, %v1195
        %v1197 = vpop.f32.mrb[0].mxu0
        %1198 = vmatprep.mubr.bf16.mxu0 %v946
        %1199 = vmatmul.mubr.bf16.gmra.mrb[0].mxu0 %v763
        %v1200 = vpop.f32.mrb[0].mxu0
        %v1201 = vadd.f32 0.0, %v1200
        %v1202 = vpop.f32.mrb[0].mxu0
        %v1203 = vpop.f32.mrb[0].mxu0
        %v1204 = vadd.f32 0.0, %v1203
        %v1205 = vpop.f32.mrb[0].mxu0
        %1206 = vmatprep.mubr.bf16.mxu0 %v949
        %1207 = vmatmul.mubr.bf16.gmra.mrb[0].mxu0 %v765
        %v1208 = vpop.f32.mrb[0].mxu0
        %v1209 = vadd.f32 0.0, %v1208
        %v1210 = vpop.f32.mrb[0].mxu0
        %v1211 = vpop.f32.mrb[0].mxu0
        %v1212 = vadd.f32 0.0, %v1211
        %v1213 = vpop.f32.mrb[0].mxu0
        %1214 = vmatprep.mubr.bf16.mxu0 %v952
        %1215 = vmatmul.mubr.bf16.gmra.mrb[0].mxu0 %v767
        %v1216 = vpop.f32.mrb[0].mxu0
        %v1217 = vadd.f32 0.0, %v1216
        %v1218 = vpop.f32.mrb[0].mxu0
        %v1219 = vpop.f32.mrb[0].mxu0
        %v1220 = vadd.f32 0.0, %v1219
        %v1221 = vpop.f32.mrb[0].mxu0
        %1222 = vmatprep.mubr.bf16.mxu0 %v955
        %1223 = vmatmul.mubr.bf16.gmra.mrb[0].mxu0 %v769
        %v1224 = vpop.f32.mrb[0].mxu0
        %v1225 = vadd.f32 0.0, %v1224
        %v1226 = vpop.f32.mrb[0].mxu0
        %v1227 = vpop.f32.mrb[0].mxu0
        %v1228 = vadd.f32 0.0, %v1227
        %v1229 = vpop.f32.mrb[0].mxu0
        %1230 = vmatprep.mubr.bf16.mxu0 %v958
        %1231 = vmatmul.mubr.bf16.gmra.mrb[0].mxu0 %v771
        %v1232 = vpop.f32.mrb[0].mxu0
        %v1233 = vadd.f32 0.0, %v1232
        %v1234 = vpop.f32.mrb[0].mxu0
        %v1235 = vpop.f32.mrb[0].mxu0
        %v1236 = vadd.f32 0.0, %v1235
        %v1237 = vpop.f32.mrb[0].mxu0
        %1238 = vmatprep.mubr.bf16.mxu0 %v961
        %1239 = vmatmul.mubr.bf16.gmra.mrb[0].mxu0 %v773
        %v1240 = vpop.f32.mrb[0].mxu0
        %v1241 = vadd.f32 0.0, %v1240
        %v1242 = vpop.f32.mrb[0].mxu0
        %v1243 = vpop.f32.mrb[0].mxu0
        %v1244 = vadd.f32 0.0, %v1243
        %v1245 = vpop.f32.mrb[0].mxu0
        %1246 = vmatprep.mubr.bf16.mxu0 %v964
        %1247 = vmatmul.mubr.bf16.gmra.mrb[0].mxu0 %v775
        %v1248 = vpop.f32.mrb[0].mxu0
        %v1249 = vadd.f32 0.0, %v1248
        %v1250 = vpop.f32.mrb[0].mxu0
        %v1251 = vpop.f32.mrb[0].mxu0
        %v1252 = vadd.f32 0.0, %v1251
        %v1253 = vpop.f32.mrb[0].mxu0
        %1254 = vdwg.mxu0
        %v1255 = vadd.f32 %v373, %v1001
        %v1256 = vadd.f32 %v374, %v1004
        %v1257 = vadd.f32 %v375, %v1009
        %v1258 = vadd.f32 %v376, %v1012
        %v1259 = vadd.f32 %v377, %v1017
        %v1260 = vadd.f32 %v378, %v1020
        %v1261 = vadd.f32 %v379, %v1025
        %v1262 = vadd.f32 %v380, %v1028
        %v1263 = vadd.f32 %v381, %v1033
        %v1264 = vadd.f32 %v382, %v1036
        %v1265 = vadd.f32 %v383, %v1041
        %v1266 = vadd.f32 %v384, %v1044
        %v1267 = vadd.f32 %v385, %v1049
        %v1268 = vadd.f32 %v386, %v1052
        %v1269 = vadd.f32 %v387, %v1057
        %v1270 = vadd.f32 %v388, %v1060
        %v1271 = vadd.f32 %v389, %v1065
        %v1272 = vadd.f32 %v390, %v1068
        %v1273 = vadd.f32 %v391, %v1073
        %v1274 = vadd.f32 %v392, %v1076
        %v1275 = vadd.f32 %v393, %v1081
        %v1276 = vadd.f32 %v394, %v1084
        %v1277 = vadd.f32 %v395, %v1089
        %v1278 = vadd.f32 %v396, %v1092
        %v1279 = vadd.f32 %v397, %v1097
        %v1280 = vadd.f32 %v398, %v1100
        %v1281 = vadd.f32 %v399, %v1105
        %v1282 = vadd.f32 %v400, %v1108
        %v1283 = vadd.f32 %v401, %v1113
        %v1284 = vadd.f32 %v402, %v1116
        %v1285 = vadd.f32 %v403, %v1121
        %v1286 = vadd.f32 %v404, %v1124
        %v1287 = vadd.f32 %v405, %v1129
        %v1288 = vadd.f32 %v406, %v1132
        %v1289 = vadd.f32 %v407, %v1137
        %v1290 = vadd.f32 %v408, %v1140
        %v1291 = vadd.f32 %v409, %v1145
        %v1292 = vadd.f32 %v410, %v1148
        %v1293 = vadd.f32 %v411, %v1153
        %v1294 = vadd.f32 %v412, %v1156
        %v1295 = vadd.f32 %v413, %v1161
        %v1296 = vadd.f32 %v414, %v1164
        %v1297 = vadd.f32 %v415, %v1169
        %v1298 = vadd.f32 %v416, %v1172
        %v1299 = vadd.f32 %v417, %v1177
        %v1300 = vadd.f32 %v418, %v1180
        %v1301 = vadd.f32 %v419, %v1185
        %v1302 = vadd.f32 %v420, %v1188
        %v1303 = vadd.f32 %v421, %v1193
        %v1304 = vadd.f32 %v422, %v1196
        %v1305 = vadd.f32 %v423, %v1201
        %v1306 = vadd.f32 %v424, %v1204
        %v1307 = vadd.f32 %v425, %v1209
        %v1308 = vadd.f32 %v426, %v1212
        %v1309 = vadd.f32 %v427, %v1217
        %v1310 = vadd.f32 %v428, %v1220
        %v1311 = vadd.f32 %v429, %v1225
        %v1312 = vadd.f32 %v430, %v1228
        %v1313 = vadd.f32 %v431, %v1233
        %v1314 = vadd.f32 %v432, %v1236
        %v1315 = vadd.f32 %v433, %v1241
        %v1316 = vadd.f32 %v434, %v1244
        %v1317 = vadd.f32 %v435, %v1249
        %v1318 = vadd.f32 %v436, %v1252
        %vm1319 = vcmask 523264
        %1320 = vst.msk [vmem:[#allocation2] sm:$0xff] %vm1319, %v1255
        %1321 = vst.msk [vmem:[#allocation2 + $0x8] sm:$0xff] %vm1319, %v1256
        %1322 = vst.msk [vmem:[#allocation2 + $0x10] sm:$0xff] %vm1319, %v1257
        %1323 = vst.msk [vmem:[#allocation2 + $0x18] sm:$0xff] %vm1319, %v1258
        %1324 = vst.msk [vmem:[#allocation2 + $0x20] sm:$0xff] %vm1319, %v1259
        %1325 = vst.msk [vmem:[#allocation2 + $0x28] sm:$0xff] %vm1319, %v1260
        %1326 = vst.msk [vmem:[#allocation2 + $0x30] sm:$0xff] %vm1319, %v1261
        %1327 = vst.msk [vmem:[#allocation2 + $0x38] sm:$0xff] %vm1319, %v1262
        %1328 = vst.msk [vmem:[#allocation2 + $0x40] sm:$0xff] %vm1319, %v1263
        %1329 = vst.msk [vmem:[#allocation2 + $0x48] sm:$0xff] %vm1319, %v1264
        %1330 = vst.msk [vmem:[#allocation2 + $0x50] sm:$0xff] %vm1319, %v1265
        %1331 = vst.msk [vmem:[#allocation2 + $0x58] sm:$0xff] %vm1319, %v1266
        %1332 = vst.msk [vmem:[#allocation2 + $0x60] sm:$0xff] %vm1319, %v1267
        %1333 = vst.msk [vmem:[#allocation2 + $0x68] sm:$0xff] %vm1319, %v1268
        %1334 = vst.msk [vmem:[#allocation2 + $0x70] sm:$0xff] %vm1319, %v1269
        %1335 = vst.msk [vmem:[#allocation2 + $0x78] sm:$0xff] %vm1319, %v1270
        %1336 = vst.msk [vmem:[#allocation2 + $0x80] sm:$0xff] %vm1319, %v1271
        %1337 = vst.msk [vmem:[#allocation2 + $0x88] sm:$0xff] %vm1319, %v1272
        %1338 = vst.msk [vmem:[#allocation2 + $0x90] sm:$0xff] %vm1319, %v1273
        %1339 = vst.msk [vmem:[#allocation2 + $0x98] sm:$0xff] %vm1319, %v1274
        %1340 = vst.msk [vmem:[#allocation2 + $0xa0] sm:$0xff] %vm1319, %v1275
        %1341 = vst.msk [vmem:[#allocation2 + $0xa8] sm:$0xff] %vm1319, %v1276
        %1342 = vst.msk [vmem:[#allocation2 + $0xb0] sm:$0xff] %vm1319, %v1277
        %1343 = vst.msk [vmem:[#allocation2 + $0xb8] sm:$0xff] %vm1319, %v1278
        %1344 = vst.msk [vmem:[#allocation2 + $0xc0] sm:$0xff] %vm1319, %v1279
        %1345 = vst.msk [vmem:[#allocation2 + $0xc8] sm:$0xff] %vm1319, %v1280
        %1346 = vst.msk [vmem:[#allocation2 + $0xd0] sm:$0xff] %vm1319, %v1281
        %1347 = vst.msk [vmem:[#allocation2 + $0xd8] sm:$0xff] %vm1319, %v1282
        %1348 = vst.msk [vmem:[#allocation2 + $0xe0] sm:$0xff] %vm1319, %v1283
        %1349 = vst.msk [vmem:[#allocation2 + $0xe8] sm:$0xff] %vm1319, %v1284
        %1350 = vst.msk [vmem:[#allocation2 + $0xf0] sm:$0xff] %vm1319, %v1285
        %1351 = vst.msk [vmem:[#allocation2 + $0xf8] sm:$0xff] %vm1319, %v1286
        %1352 = vst.msk [vmem:[#allocation2 + $0x100] sm:$0xff] %vm1319, %v1287
        %1353 = vst.msk [vmem:[#allocation2 + $0x108] sm:$0xff] %vm1319, %v1288
        %1354 = vst.msk [vmem:[#allocation2 + $0x110] sm:$0xff] %vm1319, %v1289
        %1355 = vst.msk [vmem:[#allocation2 + $0x118] sm:$0xff] %vm1319, %v1290
        %1356 = vst.msk [vmem:[#allocation2 + $0x120] sm:$0xff] %vm1319, %v1291
        %1357 = vst.msk [vmem:[#allocation2 + $0x128] sm:$0xff] %vm1319, %v1292
        %1358 = vst.msk [vmem:[#allocation2 + $0x130] sm:$0xff] %vm1319, %v1293
        %1359 = vst.msk [vmem:[#allocation2 + $0x138] sm:$0xff] %vm1319, %v1294
        %1360 = vst.msk [vmem:[#allocation2 + $0x140] sm:$0xff] %vm1319, %v1295
        %1361 = vst.msk [vmem:[#allocation2 + $0x148] sm:$0xff] %vm1319, %v1296
        %1362 = vst.msk [vmem:[#allocation2 + $0x150] sm:$0xff] %vm1319, %v1297
        %1363 = vst.msk [vmem:[#allocation2 + $0x158] sm:$0xff] %vm1319, %v1298
        %1364 = vst.msk [vmem:[#allocation2 + $0x160] sm:$0xff] %vm1319, %v1299
        %1365 = vst.msk [vmem:[#allocation2 + $0x168] sm:$0xff] %vm1319, %v1300
        %1366 = vst.msk [vmem:[#allocation2 + $0x170] sm:$0xff] %vm1319, %v1301
        %1367 = vst.msk [vmem:[#allocation2 + $0x178] sm:$0xff] %vm1319, %v1302
        %1368 = vst.msk [vmem:[#allocation2 + $0x180] sm:$0xff] %vm1319, %v1303
        %1369 = vst.msk [vmem:[#allocation2 + $0x188] sm:$0xff] %vm1319, %v1304
        %1370 = vst.msk [vmem:[#allocation2 + $0x190] sm:$0xff] %vm1319, %v1305
        %1371 = vst.msk [vmem:[#allocation2 + $0x198] sm:$0xff] %vm1319, %v1306
        %1372 = vst.msk [vmem:[#allocation2 + $0x1a0] sm:$0xff] %vm1319, %v1307
        %1373 = vst.msk [vmem:[#allocation2 + $0x1a8] sm:$0xff] %vm1319, %v1308
        %1374 = vst.msk [vmem:[#allocation2 + $0x1b0] sm:$0xff] %vm1319, %v1309
        %1375 = vst.msk [vmem:[#allocation2 + $0x1b8] sm:$0xff] %vm1319, %v1310
        %1376 = vst.msk [vmem:[#allocation2 + $0x1c0] sm:$0xff] %vm1319, %v1311
        %1377 = vst.msk [vmem:[#allocation2 + $0x1c8] sm:$0xff] %vm1319, %v1312
        %1378 = vst.msk [vmem:[#allocation2 + $0x1d0] sm:$0xff] %vm1319, %v1313
        %1379 = vst.msk [vmem:[#allocation2 + $0x1d8] sm:$0xff] %vm1319, %v1314
        %1380 = vst.msk [vmem:[#allocation2 + $0x1e0] sm:$0xff] %vm1319, %v1315
        %1381 = vst.msk [vmem:[#allocation2 + $0x1e8] sm:$0xff] %vm1319, %v1316
        %1382 = vst.msk [vmem:[#allocation2 + $0x1f0] sm:$0xff] %vm1319, %v1317
        %1383 = vst.msk [vmem:[#allocation2 + $0x1f8] sm:$0xff] %vm1319, %v1318
        // Predicated region
        $region33: #{tpu_custom_call.1} parent=27 // pred_check
          %p1384 = pneg %p304
        $region34: #{tpu_custom_call.1} parent=27 // pred_check_branch
          %1386 = sbr.rel (%p1384) target = $region36
        $region35: #{tpu_custom_call.1} parent=27 // pred_region
          %v1387 = vld [vmem:[#allocation2] sm:$0xff]
          %v1388 = vld [vmem:[#allocation2 + $0x8] sm:$0xff]
          %v1389 = vld [vmem:[#allocation2 + $0x10] sm:$0xff]
          %v1390 = vld [vmem:[#allocation2 + $0x18] sm:$0xff]
          %v1391 = vld [vmem:[#allocation2 + $0x20] sm:$0xff]
          %v1392 = vld [vmem:[#allocation2 + $0x28] sm:$0xff]
          %v1393 = vld [vmem:[#allocation2 + $0x30] sm:$0xff]
          %v1394 = vld [vmem:[#allocation2 + $0x38] sm:$0xff]
          %v1395 = vld [vmem:[#allocation2 + $0x40] sm:$0xff]
          %v1396 = vld [vmem:[#allocation2 + $0x48] sm:$0xff]
          %v1397 = vld [vmem:[#allocation2 + $0x50] sm:$0xff]
          %v1398 = vld [vmem:[#allocation2 + $0x58] sm:$0xff]
          %v1399 = vld [vmem:[#allocation2 + $0x60] sm:$0xff]
          %v1400 = vld [vmem:[#allocation2 + $0x68] sm:$0xff]
          %v1401 = vld [vmem:[#allocation2 + $0x70] sm:$0xff]
          %v1402 = vld [vmem:[#allocation2 + $0x78] sm:$0xff]
          %v1403 = vld [vmem:[#allocation2 + $0x80] sm:$0xff]
          %v1404 = vld [vmem:[#allocation2 + $0x88] sm:$0xff]
          %v1405 = vld [vmem:[#allocation2 + $0x90] sm:$0xff]
          %v1406 = vld [vmem:[#allocation2 + $0x98] sm:$0xff]
          %v1407 = vld [vmem:[#allocation2 + $0xa0] sm:$0xff]
          %v1408 = vld [vmem:[#allocation2 + $0xa8] sm:$0xff]
          %v1409 = vld [vmem:[#allocation2 + $0xb0] sm:$0xff]
          %v1410 = vld [vmem:[#allocation2 + $0xb8] sm:$0xff]
          %v1411 = vld [vmem:[#allocation2 + $0xc0] sm:$0xff]
          %v1412 = vld [vmem:[#allocation2 + $0xc8] sm:$0xff]
          %v1413 = vld [vmem:[#allocation2 + $0xd0] sm:$0xff]
          %v1414 = vld [vmem:[#allocation2 + $0xd8] sm:$0xff]
          %v1415 = vld [vmem:[#allocation2 + $0xe0] sm:$0xff]
          %v1416 = vld [vmem:[#allocation2 + $0xe8] sm:$0xff]
          %v1417 = vld [vmem:[#allocation2 + $0xf0] sm:$0xff]
          %v1418 = vld [vmem:[#allocation2 + $0xf8] sm:$0xff]
          %v1419 = vld [vmem:[#allocation2 + $0x100] sm:$0xff]
          %v1420 = vld [vmem:[#allocation2 + $0x108] sm:$0xff]
          %v1421 = vld [vmem:[#allocation2 + $0x110] sm:$0xff]
          %v1422 = vld [vmem:[#allocation2 + $0x118] sm:$0xff]
          %v1423 = vld [vmem:[#allocation2 + $0x120] sm:$0xff]
          %v1424 = vld [vmem:[#allocation2 + $0x128] sm:$0xff]
          %v1425 = vld [vmem:[#allocation2 + $0x130] sm:$0xff]
          %v1426 = vld [vmem:[#allocation2 + $0x138] sm:$0xff]
          %v1427 = vld [vmem:[#allocation2 + $0x140] sm:$0xff]
          %v1428 = vld [vmem:[#allocation2 + $0x148] sm:$0xff]
          %v1429 = vld [vmem:[#allocation2 + $0x150] sm:$0xff]
          %v1430 = vld [vmem:[#allocation2 + $0x158] sm:$0xff]
          %v1431 = vld [vmem:[#allocation2 + $0x160] sm:$0xff]
          %v1432 = vld [vmem:[#allocation2 + $0x168] sm:$0xff]
          %v1433 = vld [vmem:[#allocation2 + $0x170] sm:$0xff]
          %v1434 = vld [vmem:[#allocation2 + $0x178] sm:$0xff]
          %v1435 = vld [vmem:[#allocation2 + $0x180] sm:$0xff]
          %v1436 = vld [vmem:[#allocation2 + $0x188] sm:$0xff]
          %v1437 = vld [vmem:[#allocation2 + $0x190] sm:$0xff]
          %v1438 = vld [vmem:[#allocation2 + $0x198] sm:$0xff]
          %v1439 = vld [vmem:[#allocation2 + $0x1a0] sm:$0xff]
          %v1440 = vld [vmem:[#allocation2 + $0x1a8] sm:$0xff]
          %v1441 = vld [vmem:[#allocation2 + $0x1b0] sm:$0xff]
          %v1442 = vld [vmem:[#allocation2 + $0x1b8] sm:$0xff]
          %v1443 = vld [vmem:[#allocation2 + $0x1c0] sm:$0xff]
          %v1444 = vld [vmem:[#allocation2 + $0x1c8] sm:$0xff]
          %v1445 = vld [vmem:[#allocation2 + $0x1d0] sm:$0xff]
          %v1446 = vld [vmem:[#allocation2 + $0x1d8] sm:$0xff]
          %v1447 = vld [vmem:[#allocation2 + $0x1e0] sm:$0xff]
          %v1448 = vld [vmem:[#allocation2 + $0x1e8] sm:$0xff]
          %v1449 = vld [vmem:[#allocation2 + $0x1f0] sm:$0xff]
          %v1450 = vld [vmem:[#allocation2 + $0x1f8] sm:$0xff]
          %v1451 = vpack.c.bf16 %v1388, %v1387
          %v1452 = vpack.c.bf16 %v1390, %v1389
          %v1453 = vpack.c.bf16 %v1392, %v1391
          %v1454 = vpack.c.bf16 %v1394, %v1393
          %v1455 = vpack.c.bf16 %v1396, %v1395
          %v1456 = vpack.c.bf16 %v1398, %v1397
          %v1457 = vpack.c.bf16 %v1400, %v1399
          %v1458 = vpack.c.bf16 %v1402, %v1401
          %v1459 = vpack.c.bf16 %v1404, %v1403
          %v1460 = vpack.c.bf16 %v1406, %v1405
          %v1461 = vpack.c.bf16 %v1408, %v1407
          %v1462 = vpack.c.bf16 %v1410, %v1409
          %v1463 = vpack.c.bf16 %v1412, %v1411
          %v1464 = vpack.c.bf16 %v1414, %v1413
          %v1465 = vpack.c.bf16 %v1416, %v1415
          %v1466 = vpack.c.bf16 %v1418, %v1417
          %v1467 = vpack.c.bf16 %v1420, %v1419
          %v1468 = vpack.c.bf16 %v1422, %v1421
          %v1469 = vpack.c.bf16 %v1424, %v1423
          %v1470 = vpack.c.bf16 %v1426, %v1425
          %v1471 = vpack.c.bf16 %v1428, %v1427
          %v1472 = vpack.c.bf16 %v1430, %v1429
          %v1473 = vpack.c.bf16 %v1432, %v1431
          %v1474 = vpack.c.bf16 %v1434, %v1433
          %v1475 = vpack.c.bf16 %v1436, %v1435
          %v1476 = vpack.c.bf16 %v1438, %v1437
          %v1477 = vpack.c.bf16 %v1440, %v1439
          %v1478 = vpack.c.bf16 %v1442, %v1441
          %v1479 = vpack.c.bf16 %v1444, %v1443
          %v1480 = vpack.c.bf16 %v1446, %v1445
          %v1481 = vpack.c.bf16 %v1448, %v1447
          %v1482 = vpack.c.bf16 %v1450, %v1449
          %v1515 = vunpack.c.l.b16 %v1451
          %v1516 = vunpack.c.h.b16 %v1451
          %v1517 = vunpack.c.l.b16 %v1452
          %v1518 = vunpack.c.h.b16 %v1452
          %v1519 = vunpack.c.l.b16 %v1453
          %v1520 = vunpack.c.h.b16 %v1453
          %v1521 = vunpack.c.l.b16 %v1454
          %v1522 = vunpack.c.h.b16 %v1454
          %v1523 = vunpack.c.l.b16 %v1455
          %v1524 = vunpack.c.h.b16 %v1455
          %v1525 = vunpack.c.l.b16 %v1456
          %v1526 = vunpack.c.h.b16 %v1456
          %v1527 = vunpack.c.l.b16 %v1457
          %v1528 = vunpack.c.h.b16 %v1457
          %v1529 = vunpack.c.l.b16 %v1458
          %v1530 = vunpack.c.h.b16 %v1458
          %v1531 = vunpack.c.l.b16 %v1459
          %v1532 = vunpack.c.h.b16 %v1459
          %v1533 = vunpack.c.l.b16 %v1460
          %v1534 = vunpack.c.h.b16 %v1460
          %v1535 = vunpack.c.l.b16 %v1461
          %v1536 = vunpack.c.h.b16 %v1461
          %v1537 = vunpack.c.l.b16 %v1462
          %v1538 = vunpack.c.h.b16 %v1462
          %v1539 = vunpack.c.l.b16 %v1463
          %v1540 = vunpack.c.h.b16 %v1463
          %v1541 = vunpack.c.l.b16 %v1464
          %v1542 = vunpack.c.h.b16 %v1464
          %v1543 = vunpack.c.l.b16 %v1465
          %v1544 = vunpack.c.h.b16 %v1465
          %v1545 = vunpack.c.l.b16 %v1466
          %v1546 = vunpack.c.h.b16 %v1466
          %v1547 = vunpack.c.l.b16 %v1467
          %v1548 = vunpack.c.h.b16 %v1467
          %v1549 = vunpack.c.l.b16 %v1468
          %v1550 = vunpack.c.h.b16 %v1468
          %v1551 = vunpack.c.l.b16 %v1469
          %v1552 = vunpack.c.h.b16 %v1469
          %v1553 = vunpack.c.l.b16 %v1470
          %v1554 = vunpack.c.h.b16 %v1470
          %v1555 = vunpack.c.l.b16 %v1471
          %v1556 = vunpack.c.h.b16 %v1471
          %v1557 = vunpack.c.l.b16 %v1472
          %v1558 = vunpack.c.h.b16 %v1472
          %v1559 = vunpack.c.l.b16 %v1473
          %v1560 = vunpack.c.h.b16 %v1473
          %v1561 = vunpack.c.l.b16 %v1474
          %v1562 = vunpack.c.h.b16 %v1474
          %v1563 = vunpack.c.l.b16 %v1475
          %v1564 = vunpack.c.h.b16 %v1475
          %v1565 = vunpack.c.l.b16 %v1476
          %v1566 = vunpack.c.h.b16 %v1476
          %v1567 = vunpack.c.l.b16 %v1477
          %v1568 = vunpack.c.h.b16 %v1477
          %v1569 = vunpack.c.l.b16 %v1478
          %v1570 = vunpack.c.h.b16 %v1478
          %v1571 = vunpack.c.l.b16 %v1479
          %v1572 = vunpack.c.h.b16 %v1479
          %v1573 = vunpack.c.l.b16 %v1480
          %v1574 = vunpack.c.h.b16 %v1480
          %v1575 = vunpack.c.l.b16 %v1481
          %v1576 = vunpack.c.h.b16 %v1481
          %v1577 = vunpack.c.l.b16 %v1482
          %v1578 = vunpack.c.h.b16 %v1482
          %v1579 = vpack.c.b16 %v1515, %v1515
          %v1580 = vpack.c.b16 %v1516, %v1516
          %v1581 = vpack.c.b16 %v1517, %v1517
          %v1582 = vpack.c.b16 %v1518, %v1518
          %v1583 = vpack.c.b16 %v1519, %v1519
          %v1584 = vpack.c.b16 %v1520, %v1520
          %v1585 = vpack.c.b16 %v1521, %v1521
          %v1586 = vpack.c.b16 %v1522, %v1522
          %v1587 = vpack.c.b16 %v1523, %v1523
          %v1588 = vpack.c.b16 %v1524, %v1524
          %v1589 = vpack.c.b16 %v1525, %v1525
          %v1590 = vpack.c.b16 %v1526, %v1526
          %v1591 = vpack.c.b16 %v1527, %v1527
          %v1592 = vpack.c.b16 %v1528, %v1528
          %v1593 = vpack.c.b16 %v1529, %v1529
          %v1594 = vpack.c.b16 %v1530, %v1530
          %v1595 = vpack.c.b16 %v1531, %v1531
          %v1596 = vpack.c.b16 %v1532, %v1532
          %v1597 = vpack.c.b16 %v1533, %v1533
          %v1598 = vpack.c.b16 %v1534, %v1534
          %v1599 = vpack.c.b16 %v1535, %v1535
          %v1600 = vpack.c.b16 %v1536, %v1536
          %v1601 = vpack.c.b16 %v1537, %v1537
          %v1602 = vpack.c.b16 %v1538, %v1538
          %v1603 = vpack.c.b16 %v1539, %v1539
          %v1604 = vpack.c.b16 %v1540, %v1540
          %v1605 = vpack.c.b16 %v1541, %v1541
          %v1606 = vpack.c.b16 %v1542, %v1542
          %v1607 = vpack.c.b16 %v1543, %v1543
          %v1608 = vpack.c.b16 %v1544, %v1544
          %v1609 = vpack.c.b16 %v1545, %v1545
          %v1610 = vpack.c.b16 %v1546, %v1546
          %v1611 = vpack.c.b16 %v1547, %v1547
          %v1612 = vpack.c.b16 %v1548, %v1548
          %v1613 = vpack.c.b16 %v1549, %v1549
          %v1614 = vpack.c.b16 %v1550, %v1550
          %v1615 = vpack.c.b16 %v1551, %v1551
          %v1616 = vpack.c.b16 %v1552, %v1552
          %v1617 = vpack.c.b16 %v1553, %v1553
          %v1618 = vpack.c.b16 %v1554, %v1554
          %v1619 = vpack.c.b16 %v1555, %v1555
          %v1620 = vpack.c.b16 %v1556, %v1556
          %v1621 = vpack.c.b16 %v1557, %v1557
          %v1622 = vpack.c.b16 %v1558, %v1558
          %v1623 = vpack.c.b16 %v1559, %v1559
          %v1624 = vpack.c.b16 %v1560, %v1560
          %v1625 = vpack.c.b16 %v1561, %v1561
          %v1626 = vpack.c.b16 %v1562, %v1562
          %v1627 = vpack.c.b16 %v1563, %v1563
          %v1628 = vpack.c.b16 %v1564, %v1564
          %v1629 = vpack.c.b16 %v1565, %v1565
          %v1630 = vpack.c.b16 %v1566, %v1566
          %v1631 = vpack.c.b16 %v1567, %v1567
          %v1632 = vpack.c.b16 %v1568, %v1568
          %v1633 = vpack.c.b16 %v1569, %v1569
          %v1634 = vpack.c.b16 %v1570, %v1570
          %v1635 = vpack.c.b16 %v1571, %v1571
          %v1636 = vpack.c.b16 %v1572, %v1572
          %v1637 = vpack.c.b16 %v1573, %v1573
          %v1638 = vpack.c.b16 %v1574, %v1574
          %v1639 = vpack.c.b16 %v1575, %v1575
          %v1640 = vpack.c.b16 %v1576, %v1576
          %v1641 = vpack.c.b16 %v1577, %v1577
          %v1642 = vpack.c.b16 %v1578, %v1578
          %vm1707 = vcmask 519168
          %1708 = vst.msk [vmem:[%s301] sm:$0xf] %vm1707, %v1579
          %1709 = vst.msk [vmem:[%s301 + $0x4] sm:$0xf] %vm1707, %v1580
          %1710 = vst.msk [vmem:[%s301 + $0x8] sm:$0xf] %vm1707, %v1581
          %1711 = vst.msk [vmem:[%s301 + $0xc] sm:$0xf] %vm1707, %v1582
          %1712 = vst.msk [vmem:[%s301 + $0x10] sm:$0xf] %vm1707, %v1583
          %1713 = vst.msk [vmem:[%s301 + $0x14] sm:$0xf] %vm1707, %v1584
          %1714 = vst.msk [vmem:[%s301 + $0x18] sm:$0xf] %vm1707, %v1585
          %1715 = vst.msk [vmem:[%s301 + $0x1c] sm:$0xf] %vm1707, %v1586
          %1716 = vst.msk [vmem:[%s301 + $0x20] sm:$0xf] %vm1707, %v1587
          %1717 = vst.msk [vmem:[%s301 + $0x24] sm:$0xf] %vm1707, %v1588
          %1718 = vst.msk [vmem:[%s301 + $0x28] sm:$0xf] %vm1707, %v1589
          %1719 = vst.msk [vmem:[%s301 + $0x2c] sm:$0xf] %vm1707, %v1590
          %1720 = vst.msk [vmem:[%s301 + $0x30] sm:$0xf] %vm1707, %v1591
          %1721 = vst.msk [vmem:[%s301 + $0x34] sm:$0xf] %vm1707, %v1592
          %1722 = vst.msk [vmem:[%s301 + $0x38] sm:$0xf] %vm1707, %v1593
          %1723 = vst.msk [vmem:[%s301 + $0x3c] sm:$0xf] %vm1707, %v1594
          %1724 = vst.msk [vmem:[%s301 + $0x40] sm:$0xf] %vm1707, %v1595
          %1725 = vst.msk [vmem:[%s301 + $0x44] sm:$0xf] %vm1707, %v1596
          %1726 = vst.msk [vmem:[%s301 + $0x48] sm:$0xf] %vm1707, %v1597
          %1727 = vst.msk [vmem:[%s301 + $0x4c] sm:$0xf] %vm1707, %v1598
          %1728 = vst.msk [vmem:[%s301 + $0x50] sm:$0xf] %vm1707, %v1599
          %1729 = vst.msk [vmem:[%s301 + $0x54] sm:$0xf] %vm1707, %v1600
          %1730 = vst.msk [vmem:[%s301 + $0x58] sm:$0xf] %vm1707, %v1601
          %1731 = vst.msk [vmem:[%s301 + $0x5c] sm:$0xf] %vm1707, %v1602
          %1732 = vst.msk [vmem:[%s301 + $0x60] sm:$0xf] %vm1707, %v1603
          %1733 = vst.msk [vmem:[%s301 + $0x64] sm:$0xf] %vm1707, %v1604
          %1734 = vst.msk [vmem:[%s301 + $0x68] sm:$0xf] %vm1707, %v1605
          %1735 = vst.msk [vmem:[%s301 + $0x6c] sm:$0xf] %vm1707, %v1606
          %1736 = vst.msk [vmem:[%s301 + $0x70] sm:$0xf] %vm1707, %v1607
          %1737 = vst.msk [vmem:[%s301 + $0x74] sm:$0xf] %vm1707, %v1608
          %1738 = vst.msk [vmem:[%s301 + $0x78] sm:$0xf] %vm1707, %v1609
          %1739 = vst.msk [vmem:[%s301 + $0x7c] sm:$0xf] %vm1707, %v1610
          %1740 = vst.msk [vmem:[%s301 + $0x80] sm:$0xf] %vm1707, %v1611
          %1741 = vst.msk [vmem:[%s301 + $0x84] sm:$0xf] %vm1707, %v1612
          %1742 = vst.msk [vmem:[%s301 + $0x88] sm:$0xf] %vm1707, %v1613
          %1743 = vst.msk [vmem:[%s301 + $0x8c] sm:$0xf] %vm1707, %v1614
          %1744 = vst.msk [vmem:[%s301 + $0x90] sm:$0xf] %vm1707, %v1615
          %1745 = vst.msk [vmem:[%s301 + $0x94] sm:$0xf] %vm1707, %v1616
          %1746 = vst.msk [vmem:[%s301 + $0x98] sm:$0xf] %vm1707, %v1617
          %1747 = vst.msk [vmem:[%s301 + $0x9c] sm:$0xf] %vm1707, %v1618
          %1748 = vst.msk [vmem:[%s301 + $0xa0] sm:$0xf] %vm1707, %v1619
          %1749 = vst.msk [vmem:[%s301 + $0xa4] sm:$0xf] %vm1707, %v1620
          %1750 = vst.msk [vmem:[%s301 + $0xa8] sm:$0xf] %vm1707, %v1621
          %1751 = vst.msk [vmem:[%s301 + $0xac] sm:$0xf] %vm1707, %v1622
          %1752 = vst.msk [vmem:[%s301 + $0xb0] sm:$0xf] %vm1707, %v1623
          %1753 = vst.msk [vmem:[%s301 + $0xb4] sm:$0xf] %vm1707, %v1624
          %1754 = vst.msk [vmem:[%s301 + $0xb8] sm:$0xf] %vm1707, %v1625
          %1755 = vst.msk [vmem:[%s301 + $0xbc] sm:$0xf] %vm1707, %v1626
          %1756 = vst.msk [vmem:[%s301 + $0xc0] sm:$0xf] %vm1707, %v1627
          %1757 = vst.msk [vmem:[%s301 + $0xc4] sm:$0xf] %vm1707, %v1628
          %1758 = vst.msk [vmem:[%s301 + $0xc8] sm:$0xf] %vm1707, %v1629
          %1759 = vst.msk [vmem:[%s301 + $0xcc] sm:$0xf] %vm1707, %v1630
          %1760 = vst.msk [vmem:[%s301 + $0xd0] sm:$0xf] %vm1707, %v1631
          %1761 = vst.msk [vmem:[%s301 + $0xd4] sm:$0xf] %vm1707, %v1632
          %1762 = vst.msk [vmem:[%s301 + $0xd8] sm:$0xf] %vm1707, %v1633
          %1763 = vst.msk [vmem:[%s301 + $0xdc] sm:$0xf] %vm1707, %v1634
          %1764 = vst.msk [vmem:[%s301 + $0xe0] sm:$0xf] %vm1707, %v1635
          %1765 = vst.msk [vmem:[%s301 + $0xe4] sm:$0xf] %vm1707, %v1636
          %1766 = vst.msk [vmem:[%s301 + $0xe8] sm:$0xf] %vm1707, %v1637
          %1767 = vst.msk [vmem:[%s301 + $0xec] sm:$0xf] %vm1707, %v1638
          %1768 = vst.msk [vmem:[%s301 + $0xf0] sm:$0xf] %vm1707, %v1639
          %1769 = vst.msk [vmem:[%s301 + $0xf4] sm:$0xf] %vm1707, %v1640
          %1770 = vst.msk [vmem:[%s301 + $0xf8] sm:$0xf] %vm1707, %v1641
          %1771 = vst.msk [vmem:[%s301 + $0xfc] sm:$0xf] %vm1707, %v1642
          %v1772 = vsel %vm1319, %v1387, 0.0
          %v1773 = vsel %vm1319, %v1388, 0.0
          %v1774 = vadd.f32 %v1772, %v1773
          %v1775 = vsel %vm1319, %v1389, 0.0
          %v1776 = vadd.f32 %v1774, %v1775
          %v1777 = vsel %vm1319, %v1390, 0.0
          %v1778 = vadd.f32 %v1776, %v1777
          %v1779 = vsel %vm1319, %v1391, 0.0
          %v1780 = vadd.f32 %v1778, %v1779
          %v1781 = vsel %vm1319, %v1392, 0.0
          %v1782 = vadd.f32 %v1780, %v1781
          %v1783 = vsel %vm1319, %v1393, 0.0
          %v1784 = vadd.f32 %v1782, %v1783
          %v1785 = vsel %vm1319, %v1394, 0.0
          %v1786 = vadd.f32 %v1784, %v1785
          %v1787 = vsel %vm1319, %v1395, 0.0
          %v1788 = vadd.f32 %v1786, %v1787
          %v1789 = vsel %vm1319, %v1396, 0.0
          %v1790 = vadd.f32 %v1788, %v1789
          %v1791 = vsel %vm1319, %v1397, 0.0
          %v1792 = vadd.f32 %v1790, %v1791
          %v1793 = vsel %vm1319, %v1398, 0.0
          %v1794 = vadd.f32 %v1792, %v1793
          %v1795 = vsel %vm1319, %v1399, 0.0
          %v1796 = vadd.f32 %v1794, %v1795
          %v1797 = vsel %vm1319, %v1400, 0.0
          %v1798 = vadd.f32 %v1796, %v1797
          %v1799 = vsel %vm1319, %v1401, 0.0
          %v1800 = vadd.f32 %v1798, %v1799
          %v1801 = vsel %vm1319, %v1402, 0.0
          %v1802 = vadd.f32 %v1800, %v1801
          %v1803 = vsel %vm1319, %v1403, 0.0
          %v1804 = vadd.f32 %v1802, %v1803
          %v1805 = vsel %vm1319, %v1404, 0.0
          %v1806 = vadd.f32 %v1804, %v1805
          %v1807 = vsel %vm1319, %v1405, 0.0
          %v1808 = vadd.f32 %v1806, %v1807
          %v1809 = vsel %vm1319, %v1406, 0.0
          %v1810 = vadd.f32 %v1808, %v1809
          %v1811 = vsel %vm1319, %v1407, 0.0
          %v1812 = vadd.f32 %v1810, %v1811
          %v1813 = vsel %vm1319, %v1408, 0.0
          %v1814 = vadd.f32 %v1812, %v1813
          %v1815 = vsel %vm1319, %v1409, 0.0
          %v1816 = vadd.f32 %v1814, %v1815
          %v1817 = vsel %vm1319, %v1410, 0.0
          %v1818 = vadd.f32 %v1816, %v1817
          %v1819 = vsel %vm1319, %v1411, 0.0
          %v1820 = vadd.f32 %v1818, %v1819
          %v1821 = vsel %vm1319, %v1412, 0.0
          %v1822 = vadd.f32 %v1820, %v1821
          %v1823 = vsel %vm1319, %v1413, 0.0
          %v1824 = vadd.f32 %v1822, %v1823
          %v1825 = vsel %vm1319, %v1414, 0.0
          %v1826 = vadd.f32 %v1824, %v1825
          %v1827 = vsel %vm1319, %v1415, 0.0
          %v1828 = vadd.f32 %v1826, %v1827
          %v1829 = vsel %vm1319, %v1416, 0.0
          %v1830 = vadd.f32 %v1828, %v1829
          %v1831 = vsel %vm1319, %v1417, 0.0
          %v1832 = vadd.f32 %v1830, %v1831
          %v1833 = vsel %vm1319, %v1418, 0.0
          %v1834 = vadd.f32 %v1832, %v1833
          %v1835 = vsel %vm1319, %v1419, 0.0
          %v1836 = vadd.f32 %v1834, %v1835
          %v1837 = vsel %vm1319, %v1420, 0.0
          %v1838 = vadd.f32 %v1836, %v1837
          %v1839 = vsel %vm1319, %v1421, 0.0
          %v1840 = vadd.f32 %v1838, %v1839
          %v1841 = vsel %vm1319, %v1422, 0.0
          %v1842 = vadd.f32 %v1840, %v1841
          %v1843 = vsel %vm1319, %v1423, 0.0
          %v1844 = vadd.f32 %v1842, %v1843
          %v1845 = vsel %vm1319, %v1424, 0.0
          %v1846 = vadd.f32 %v1844, %v1845
          %v1847 = vsel %vm1319, %v1425, 0.0
          %v1848 = vadd.f32 %v1846, %v1847
          %v1849 = vsel %vm1319, %v1426, 0.0
          %v1850 = vadd.f32 %v1848, %v1849
          %v1851 = vsel %vm1319, %v1427, 0.0
          %v1852 = vadd.f32 %v1850, %v1851
          %v1853 = vsel %vm1319, %v1428, 0.0
          %v1854 = vadd.f32 %v1852, %v1853
          %v1855 = vsel %vm1319, %v1429, 0.0
          %v1856 = vadd.f32 %v1854, %v1855
          %v1857 = vsel %vm1319, %v1430, 0.0
          %v1858 = vadd.f32 %v1856, %v1857
          %v1859 = vsel %vm1319, %v1431, 0.0
          %v1860 = vadd.f32 %v1858, %v1859
          %v1861 = vsel %vm1319, %v1432, 0.0
          %v1862 = vadd.f32 %v1860, %v1861
          %v1863 = vsel %vm1319, %v1433, 0.0
          %v1864 = vadd.f32 %v1862, %v1863
          %v1865 = vsel %vm1319, %v1434, 0.0
          %v1866 = vadd.f32 %v1864, %v1865
          %v1867 = vsel %vm1319, %v1435, 0.0
          %v1868 = vadd.f32 %v1866, %v1867
          %v1869 = vsel %vm1319, %v1436, 0.0
          %v1870 = vadd.f32 %v1868, %v1869
          %v1871 = vsel %vm1319, %v1437, 0.0
          %v1872 = vadd.f32 %v1870, %v1871
          %v1873 = vsel %vm1319, %v1438, 0.0
          %v1874 = vadd.f32 %v1872, %v1873
          %v1875 = vsel %vm1319, %v1439, 0.0
          %v1876 = vadd.f32 %v1874, %v1875
          %v1877 = vsel %vm1319, %v1440, 0.0
          %v1878 = vadd.f32 %v1876, %v1877
          %v1879 = vsel %vm1319, %v1441, 0.0
          %v1880 = vadd.f32 %v1878, %v1879
          %v1881 = vsel %vm1319, %v1442, 0.0
          %v1882 = vadd.f32 %v1880, %v1881
          %v1883 = vsel %vm1319, %v1443, 0.0
          %v1884 = vadd.f32 %v1882, %v1883
          %v1885 = vsel %vm1319, %v1444, 0.0
          %v1886 = vadd.f32 %v1884, %v1885
          %v1887 = vsel %vm1319, %v1445, 0.0
          %v1888 = vadd.f32 %v1886, %v1887
          %v1889 = vsel %vm1319, %v1446, 0.0
          %v1890 = vadd.f32 %v1888, %v1889
          %v1891 = vsel %vm1319, %v1447, 0.0
          %v1892 = vadd.f32 %v1890, %v1891
          %v1893 = vsel %vm1319, %v1448, 0.0
          %v1894 = vadd.f32 %v1892, %v1893
          %v1895 = vsel %vm1319, %v1449, 0.0
          %v1896 = vadd.f32 %v1894, %v1895
          %v1897 = vsel %vm1319, %v1450, 0.0
          %v1898 = vadd.f32 %v1896, %v1897
          %v1899 = vrot.slane %v1898, 4
          %v1900 = vadd.f32 %v1898, %v1899
          %v1901 = vrot.slane %v1900, 2
          %v1902 = vadd.f32 %v1900, %v1901
          %v1903 = vrot.slane %v1902, 1
          %v1904 = vadd.f32 %v1902, %v1903
          %vm1905 = vcmask 516096
          %1906 = vst.msk [vmem:[%s266] sm:$0x1] %vm1905, %v1904
          %v1907 = vmul.f32 %v1387, %v1387
          %v1908 = vmul.f32 %v1388, %v1388
          %v1909 = vmul.f32 %v1389, %v1389
          %v1910 = vmul.f32 %v1390, %v1390
          %v1911 = vmul.f32 %v1391, %v1391
          %v1912 = vmul.f32 %v1392, %v1392
          %v1913 = vmul.f32 %v1393, %v1393
          %v1914 = vmul.f32 %v1394, %v1394
          %v1915 = vmul.f32 %v1395, %v1395
          %v1916 = vmul.f32 %v1396, %v1396
          %v1917 = vmul.f32 %v1397, %v1397
          %v1918 = vmul.f32 %v1398, %v1398
          %v1919 = vmul.f32 %v1399, %v1399
          %v1920 = vmul.f32 %v1400, %v1400
          %v1921 = vmul.f32 %v1401, %v1401
          %v1922 = vmul.f32 %v1402, %v1402
          %v1923 = vmul.f32 %v1403, %v1403
          %v1924 = vmul.f32 %v1404, %v1404
          %v1925 = vmul.f32 %v1405, %v1405
          %v1926 = vmul.f32 %v1406, %v1406
          %v1927 = vmul.f32 %v1407, %v1407
          %v1928 = vmul.f32 %v1408, %v1408
          %v1929 = vmul.f32 %v1409, %v1409
          %v1930 = vmul.f32 %v1410, %v1410
          %v1931 = vmul.f32 %v1411, %v1411
          %v1932 = vmul.f32 %v1412, %v1412
          %v1933 = vmul.f32 %v1413, %v1413
          %v1934 = vmul.f32 %v1414, %v1414
          %v1935 = vmul.f32 %v1415, %v1415
          %v1936 = vmul.f32 %v1416, %v1416
          %v1937 = vmul.f32 %v1417, %v1417
          %v1938 = vmul.f32 %v1418, %v1418
          %v1939 = vmul.f32 %v1419, %v1419
          %v1940 = vmul.f32 %v1420, %v1420
          %v1941 = vmul.f32 %v1421, %v1421
          %v1942 = vmul.f32 %v1422, %v1422
          %v1943 = vmul.f32 %v1423, %v1423
          %v1944 = vmul.f32 %v1424, %v1424
          %v1945 = vmul.f32 %v1425, %v1425
          %v1946 = vmul.f32 %v1426, %v1426
          %v1947 = vmul.f32 %v1427, %v1427
          %v1948 = vmul.f32 %v1428, %v1428
          %v1949 = vmul.f32 %v1429, %v1429
          %v1950 = vmul.f32 %v1430, %v1430
          %v1951 = vmul.f32 %v1431, %v1431
          %v1952 = vmul.f32 %v1432, %v1432
          %v1953 = vmul.f32 %v1433, %v1433
          %v1954 = vmul.f32 %v1434, %v1434
          %v1955 = vmul.f32 %v1435, %v1435
          %v1956 = vmul.f32 %v1436, %v1436
          %v1957 = vmul.f32 %v1437, %v1437
          %v1958 = vmul.f32 %v1438, %v1438
          %v1959 = vmul.f32 %v1439, %v1439
          %v1960 = vmul.f32 %v1440, %v1440
          %v1961 = vmul.f32 %v1441, %v1441
          %v1962 = vmul.f32 %v1442, %v1442
          %v1963 = vmul.f32 %v1443, %v1443
          %v1964 = vmul.f32 %v1444, %v1444
          %v1965 = vmul.f32 %v1445, %v1445
          %v1966 = vmul.f32 %v1446, %v1446
          %v1967 = vmul.f32 %v1447, %v1447
          %v1968 = vmul.f32 %v1448, %v1448
          %v1969 = vmul.f32 %v1449, %v1449
          %v1970 = vmul.f32 %v1450, %v1450
          %v1971 = vsel %vm1319, %v1907, 0.0
          %v1972 = vsel %vm1319, %v1908, 0.0
          %v1973 = vadd.f32 %v1971, %v1972
          %v1974 = vsel %vm1319, %v1909, 0.0
          %v1975 = vadd.f32 %v1973, %v1974
          %v1976 = vsel %vm1319, %v1910, 0.0
          %v1977 = vadd.f32 %v1975, %v1976
          %v1978 = vsel %vm1319, %v1911, 0.0
          %v1979 = vadd.f32 %v1977, %v1978
          %v1980 = vsel %vm1319, %v1912, 0.0
          %v1981 = vadd.f32 %v1979, %v1980
          %v1982 = vsel %vm1319, %v1913, 0.0
          %v1983 = vadd.f32 %v1981, %v1982
          %v1984 = vsel %vm1319, %v1914, 0.0
          %v1985 = vadd.f32 %v1983, %v1984
          %v1986 = vsel %vm1319, %v1915, 0.0
          %v1987 = vadd.f32 %v1985, %v1986
          %v1988 = vsel %vm1319, %v1916, 0.0
          %v1989 = vadd.f32 %v1987, %v1988
          %v1990 = vsel %vm1319, %v1917, 0.0
          %v1991 = vadd.f32 %v1989, %v1990
          %v1992 = vsel %vm1319, %v1918, 0.0
          %v1993 = vadd.f32 %v1991, %v1992
          %v1994 = vsel %vm1319, %v1919, 0.0
          %v1995 = vadd.f32 %v1993, %v1994
          %v1996 = vsel %vm1319, %v1920, 0.0
          %v1997 = vadd.f32 %v1995, %v1996
          %v1998 = vsel %vm1319, %v1921, 0.0
          %v1999 = vadd.f32 %v1997, %v1998
          %v2000 = vsel %vm1319, %v1922, 0.0
          %v2001 = vadd.f32 %v1999, %v2000
          %v2002 = vsel %vm1319, %v1923, 0.0
          %v2003 = vadd.f32 %v2001, %v2002
          %v2004 = vsel %vm1319, %v1924, 0.0
          %v2005 = vadd.f32 %v2003, %v2004
          %v2006 = vsel %vm1319, %v1925, 0.0
          %v2007 = vadd.f32 %v2005, %v2006
          %v2008 = vsel %vm1319, %v1926, 0.0
          %v2009 = vadd.f32 %v2007, %v2008
          %v2010 = vsel %vm1319, %v1927, 0.0
          %v2011 = vadd.f32 %v2009, %v2010
          %v2012 = vsel %vm1319, %v1928, 0.0
          %v2013 = vadd.f32 %v2011, %v2012
          %v2014 = vsel %vm1319, %v1929, 0.0
          %v2015 = vadd.f32 %v2013, %v2014
          %v2016 = vsel %vm1319, %v1930, 0.0
          %v2017 = vadd.f32 %v2015, %v2016
          %v2018 = vsel %vm1319, %v1931, 0.0
          %v2019 = vadd.f32 %v2017, %v2018
          %v2020 = vsel %vm1319, %v1932, 0.0
          %v2021 = vadd.f32 %v2019, %v2020
          %v2022 = vsel %vm1319, %v1933, 0.0
          %v2023 = vadd.f32 %v2021, %v2022
          %v2024 = vsel %vm1319, %v1934, 0.0
          %v2025 = vadd.f32 %v2023, %v2024
          %v2026 = vsel %vm1319, %v1935, 0.0
          %v2027 = vadd.f32 %v2025, %v2026
          %v2028 = vsel %vm1319, %v1936, 0.0
          %v2029 = vadd.f32 %v2027, %v2028
          %v2030 = vsel %vm1319, %v1937, 0.0
          %v2031 = vadd.f32 %v2029, %v2030
          %v2032 = vsel %vm1319, %v1938, 0.0
          %v2033 = vadd.f32 %v2031, %v2032
          %v2034 = vsel %vm1319, %v1939, 0.0
          %v2035 = vadd.f32 %v2033, %v2034
          %v2036 = vsel %vm1319, %v1940, 0.0
          %v2037 = vadd.f32 %v2035, %v2036
          %v2038 = vsel %vm1319, %v1941, 0.0
          %v2039 = vadd.f32 %v2037, %v2038
          %v2040 = vsel %vm1319, %v1942, 0.0
          %v2041 = vadd.f32 %v2039, %v2040
          %v2042 = vsel %vm1319, %v1943, 0.0
          %v2043 = vadd.f32 %v2041, %v2042
          %v2044 = vsel %vm1319, %v1944, 0.0
          %v2045 = vadd.f32 %v2043, %v2044
          %v2046 = vsel %vm1319, %v1945, 0.0
          %v2047 = vadd.f32 %v2045, %v2046
          %v2048 = vsel %vm1319, %v1946, 0.0
          %v2049 = vadd.f32 %v2047, %v2048
          %v2050 = vsel %vm1319, %v1947, 0.0
          %v2051 = vadd.f32 %v2049, %v2050
          %v2052 = vsel %vm1319, %v1948, 0.0
          %v2053 = vadd.f32 %v2051, %v2052
          %v2054 = vsel %vm1319, %v1949, 0.0
          %v2055 = vadd.f32 %v2053, %v2054
          %v2056 = vsel %vm1319, %v1950, 0.0
          %v2057 = vadd.f32 %v2055, %v2056
          %v2058 = vsel %vm1319, %v1951, 0.0
          %v2059 = vadd.f32 %v2057, %v2058
          %v2060 = vsel %vm1319, %v1952, 0.0
          %v2061 = vadd.f32 %v2059, %v2060
          %v2062 = vsel %vm1319, %v1953, 0.0
          %v2063 = vadd.f32 %v2061, %v2062
          %v2064 = vsel %vm1319, %v1954, 0.0
          %v2065 = vadd.f32 %v2063, %v2064
          %v2066 = vsel %vm1319, %v1955, 0.0
          %v2067 = vadd.f32 %v2065, %v2066
          %v2068 = vsel %vm1319, %v1956, 0.0
          %v2069 = vadd.f32 %v2067, %v2068
          %v2070 = vsel %vm1319, %v1957, 0.0
          %v2071 = vadd.f32 %v2069, %v2070
          %v2072 = vsel %vm1319, %v1958, 0.0
          %v2073 = vadd.f32 %v2071, %v2072
          %v2074 = vsel %vm1319, %v1959, 0.0
          %v2075 = vadd.f32 %v2073, %v2074
          %v2076 = vsel %vm1319, %v1960, 0.0
          %v2077 = vadd.f32 %v2075, %v2076
          %v2078 = vsel %vm1319, %v1961, 0.0
          %v2079 = vadd.f32 %v2077, %v2078
          %v2080 = vsel %vm1319, %v1962, 0.0
          %v2081 = vadd.f32 %v2079, %v2080
          %v2082 = vsel %vm1319, %v1963, 0.0
          %v2083 = vadd.f32 %v2081, %v2082
          %v2084 = vsel %vm1319, %v1964, 0.0
          %v2085 = vadd.f32 %v2083, %v2084
          %v2086 = vsel %vm1319, %v1965, 0.0
          %v2087 = vadd.f32 %v2085, %v2086
          %v2088 = vsel %vm1319, %v1966, 0.0
          %v2089 = vadd.f32 %v2087, %v2088
          %v2090 = vsel %vm1319, %v1967, 0.0
          %v2091 = vadd.f32 %v2089, %v2090
          %v2092 = vsel %vm1319, %v1968, 0.0
          %v2093 = vadd.f32 %v2091, %v2092
          %v2094 = vsel %vm1319, %v1969, 0.0
          %v2095 = vadd.f32 %v2093, %v2094
          %v2096 = vsel %vm1319, %v1970, 0.0
          %v2097 = vadd.f32 %v2095, %v2096
          %v2098 = vrot.slane %v2097, 4
          %v2099 = vadd.f32 %v2097, %v2098
          %v2100 = vrot.slane %v2099, 2
          %v2101 = vadd.f32 %v2099, %v2100
          %v2102 = vrot.slane %v2101, 1
          %v2103 = vadd.f32 %v2101, %v2102
          %2104 = vst.msk [vmem:[%s272] sm:$0x1] %vm1905, %v2103
        $region36: #{tpu_custom_call.1} parent=27 // pred_fallthru
          _
        %s2105 = smul.u32 64, %s27
        %p2106 = scmp.lt.s32.totalorder %s2105, 3135
        %s2107 = scalar_select %p2106, %s2105, 3135
        %p2108 = scmp.lt.s32.totalorder %s28, 0
        %s2109 = scalar_select %p2108, %s28, 0
        %s2110 = sadd.s32 %s2109, %s2107
        %s2111 = smul.addr %s2110, 4
        %s2112 = scalar_lea.vmem %s2, %s2111
        %s2113 = sand.u32 %s135, 1
        %s2114 = scalar_lea.sflag [#allocation4], %s2113
        %s2115 = sand.u32 %s135, 1
        %s2116 = scalar_lea.vmem [#allocation3], %s2115
        %s2117 = sand.u32 %s163, 1
        %s2118 = scalar_lea.sflag [#allocation6], %s2117
        %s2119 = sand.u32 %s163, 1
        %s2120 = scalar_lea.vmem [#allocation5], %s2119
        // Predicated region
        $region37: #{tpu_custom_call.1} parent=27 // pred_check
          %p2121 = pneg %p117
        $region38: #{tpu_custom_call.1} parent=27 // pred_check_branch
          %2123 = sbr.rel (%p2121) target = $region40
        $region39: #{tpu_custom_call.1} parent=27 // pred_region
          %s2124 = smul.u32 64, %s27
        $region40: #{tpu_custom_call.1} parent=27 // pred_fallthru
          _
        // Predicated region
        $region41: #{tpu_custom_call.1} parent=27 // pred_check
          %p2125 = pneg %p145
        $region42: #{tpu_custom_call.1} parent=27 // pred_check_branch
          %2127 = sbr.rel (%p2125) target = $region44
        $region43: #{tpu_custom_call.1} parent=27 // pred_region
          %s2129 = ssub.s32 16, 16
          %2130 = vsyncadd %s2114, %s2129
          %s2131 = sadd.s32 %s28, %s27
          %s2132 = smul.addr %s2131, 16
          %s2133 = scalar_lea.hbm %s3, %s2132
          %s2135 = sshll.u32 %s2116, 4
          %s2136 = int_to_ptr.vmem [resolvable:$true] %s2135
          %2138 = dma.vmem_to_hbm [thread:$0]  %s2136, 16, %s2133, %s2114
        $region44: #{tpu_custom_call.1} parent=27 // pred_fallthru
          _
        // Predicated region
        $region45: #{tpu_custom_call.1} parent=27 // pred_check
          %p2139 = pneg %p173
        $region46: #{tpu_custom_call.1} parent=27 // pred_check_branch
          %2141 = sbr.rel (%p2139) target = $region48
        $region47: #{tpu_custom_call.1} parent=27 // pred_region
          %s2143 = ssub.s32 16, 16
          %2144 = vsyncadd %s2118, %s2143
          %s2145 = sadd.s32 %s28, %s27
          %s2146 = smul.addr %s2145, 16
          %s2147 = scalar_lea.hbm %s4, %s2146
          %s2149 = sshll.u32 %s2120, 4
          %s2150 = int_to_ptr.vmem [resolvable:$true] %s2149
          %2152 = dma.vmem_to_hbm [thread:$0]  %s2150, 16, %s2147, %s2118
        $region48: #{tpu_custom_call.1} parent=27 // pred_fallthru
          _
      $region28: #{tpu_custom_call.1} parent=5 // pred_fallthru
        _
      %p2153 = scmp.le.s32.totalorder 2, %s17
      // Predicated region
      $region49: #{tpu_custom_call.1} parent=5 // pred_check
        %p2154 = pneg %p2153
      $region50: #{tpu_custom_call.1} parent=5 // pred_check_branch
        %2156 = sbr.rel (%p2154) target = $region52
      $region51: #{tpu_custom_call.1} parent=5 // pred_region
        %s2157 = ssub.s32 %s17, 2
        // Predicated region
        $region53: #{tpu_custom_call.1} parent=51 // pred_check
          %p2158 = pneg %p123
        $region54: #{tpu_custom_call.1} parent=51 // pred_check_branch
          %2160 = sbr.rel (%p2158) target = $region56
        $region55: #{tpu_custom_call.1} parent=51 // pred_region
          %s2161 = smul.u32 64, %s30
          %p2162 = scmp.lt.s32.totalorder %s2161, 3135
          %s2163 = scalar_select %p2162, %s2161, 3135
          %p2164 = scmp.lt.s32.totalorder %s31, 0
          %s2165 = scalar_select %p2164, %s31, 0
          %s2166 = sadd.s32 %s2165, %s2163
          %s2167 = smul.addr %s2166, 4
          %s2168 = scalar_lea.vmem %s2, %s2167
        $region56: #{tpu_custom_call.1} parent=51 // pred_fallthru
          _
        // Predicated region
        $region57: #{tpu_custom_call.1} parent=51 // pred_check
          %p2169 = pneg %p151
        $region58: #{tpu_custom_call.1} parent=51 // pred_check_branch
          %2171 = sbr.rel (%p2169) target = $region60
        $region59: #{tpu_custom_call.1} parent=51 // pred_region
          %s2172 = sand.u32 %s136, 1
          %s2173 = scalar_lea.sflag [#allocation4], %s2172
          %s2174 = sand.u32 %s136, 1
          %s2175 = scalar_lea.vmem [#allocation3], %s2174
          %2176 = dma.done %s2173, 16
        $region60: #{tpu_custom_call.1} parent=51 // pred_fallthru
          _
        // Predicated region
        $region61: #{tpu_custom_call.1} parent=51 // pred_check
          %p2177 = pneg %p179
        $region62: #{tpu_custom_call.1} parent=51 // pred_check_branch
          %2179 = sbr.rel (%p2177) target = $region64
        $region63: #{tpu_custom_call.1} parent=51 // pred_region
          %s2180 = sand.u32 %s164, 1
          %s2181 = scalar_lea.sflag [#allocation6], %s2180
          %s2182 = sand.u32 %s164, 1
          %s2183 = scalar_lea.vmem [#allocation5], %s2182
          %2184 = dma.done %s2181, 16
        $region64: #{tpu_custom_call.1} parent=51 // pred_fallthru
          _
      $region52: #{tpu_custom_call.1} parent=5 // pred_fallthru
        _
    $region6: #{tpu_custom_call.1} parent=1 // loop_footer
      %s21 = sadd.s32 1, %s17
    $region7: #{tpu_custom_call.1} parent=1 // loop_footer_branch
      %16 = sbr.rel target = $region3
    $region8: #{tpu_custom_call.1} parent=1 // loop_exit
      _
    %2185 = vsyncpa [#allocation4], 1
    %s2186 = scalar_lea.sflag [#allocation4], 1
    %2187 = vsyncpa %s2186, 1
    %2188 = vsyncpa [#allocation6], 1
    %s2189 = scalar_lea.sflag [#allocation6], 1
    %2190 = vsyncpa %s2189, 1

</llo_original>
